<compile_context>
chip_gen: v5e
topology: v5e:2x2
jax: 0.10.0
libtpu: 0.0.40
codegen_flags: <defaults>
</compile_context>

<pallas_src>
import functools

import jax
import jax.numpy as jnp
from jax import lax
from jax.experimental import pallas as pl
from jax.experimental.pallas import tpu as pltpu


# ----------------------------------------------------------------------------
# Shared math helpers (used both inside kernels and by the pure-JAX reference)
# ----------------------------------------------------------------------------
def _layer_norm(x, gamma, beta, eps=1e-5):
    mu = jnp.mean(x, axis=-1, keepdims=True)
    var = jnp.mean((x - mu) ** 2, axis=-1, keepdims=True)
    return (x - mu) * lax.rsqrt(var + eps) * gamma + beta


def _gelu(x):
    # tanh approximation (EUP-friendly).
    # TODO(synk): PyTorch nn.GELU uses the exact erf form; tanh approximation
    # differs by <~1e-3 and is used consistently in kernels and reference.
    c = 0.7978845608028654  # sqrt(2/pi)
    return 0.5 * x * (1.0 + jnp.tanh(c * (x + 0.044715 * x * x * x)))


# ----------------------------------------------------------------------------
# Kernel 1: encoder CrossAttn (LayerNorms + MultiheadAttention + MLP), fused.
# One batch row per grid step; all in-kernel ops are plain 2-D (per-head
# weights are pre-split in the wrapper so no lane slicing / concatenation).
# ----------------------------------------------------------------------------
def _cross_attn_kernel(kv_ref, qemb_ref, ln_kv_ref, ln_q_ref,
                       wq_ref, bq_ref, wk_ref, bk_ref, wv_ref, bv_ref,
                       wo_ref, bo_ref, ln_m_ref, w1m_ref, b1m_ref,
                       w2m_ref, b2m_ref, out_ref, *, n_heads):
    f32 = jnp.float32
    x = kv_ref[0].astype(f32)                       # (S, Dk)  one batch row
    qe = qemb_ref[...].astype(f32)                  # (Q, Dq)  shared query

    nk = _layer_norm(x, ln_kv_ref[0:1, :], ln_kv_ref[1:2, :])
    nq = _layer_norm(qe, ln_q_ref[0:1, :], ln_q_ref[1:2, :])

    dq = qe.shape[-1]
    hd = dq // n_heads
    scale = 1.0 / float(hd) ** 0.5

    # concat_h(o_h) @ Wo == sum_h o_h @ Wo[h*hd:(h+1)*hd, :]
    attn = jnp.zeros(qe.shape, f32)
    for h in range(n_heads):
        qh = (jnp.dot(nq, wq_ref[h], preferred_element_type=f32) + bq_ref[h]) * scale
        kh = jnp.dot(nk, wk_ref[h], preferred_element_type=f32) + bk_ref[h]
        vh = jnp.dot(nk, wv_ref[h], preferred_element_type=f32) + bv_ref[h]
        s = jnp.dot(qh, kh.T, preferred_element_type=f32)        # (Q, S)
        s = s - jnp.max(s, axis=-1, keepdims=True)
        p = jnp.exp(s)
        p = p / jnp.sum(p, axis=-1, keepdims=True)
        oh = jnp.dot(p, vh, preferred_element_type=f32)           # (Q, hd)
        attn = attn + jnp.dot(oh, wo_ref[h], preferred_element_type=f32)
    attn = attn + bo_ref[0:1, :]
    # TODO(synk): attention weights (need_weights) are unused downstream and
    # are not materialized.

    lat = attn + qe                                 # residual with raw query
    m = _layer_norm(lat, ln_m_ref[0:1, :], ln_m_ref[1:2, :])
    m = _gelu(jnp.dot(m, w1m_ref[...], preferred_element_type=f32) + b1m_ref[0:1, :])
    m = jnp.dot(m, w2m_ref[...], preferred_element_type=f32) + b2m_ref[0:1, :]
    out_ref[0] = (m + lat).astype(out_ref.dtype)


def cross_attn_forward(key_vals, enc, n_heads):
    B, S, Dk = key_vals.shape
    Q, D = enc["query_emb"].shape
    hd = D // n_heads

    def cols(w, b):  # split output columns into per-head stacks
        w_h = jnp.transpose(w.reshape(w.shape[0], n_heads, hd), (1, 0, 2))
        b_h = jnp.transpose(b.reshape(1, n_heads, hd), (1, 0, 2))
        return w_h, b_h

    wq_h, bq_h = cols(enc["wq"], enc["bq"])
    wk_h, bk_h = cols(enc["wk"], enc["bk"])
    wv_h, bv_h = cols(enc["wv"], enc["bv"])
    wo_h = enc["wo"].reshape(n_heads, hd, D)

    c = lambda shape: pl.BlockSpec(shape, lambda b: (0,) * len(shape))
    kernel = functools.partial(_cross_attn_kernel, n_heads=n_heads)
    return pl.pallas_call(
        kernel,
        out_shape=jax.ShapeDtypeStruct((B, Q, D), jnp.float32),
        grid=(B,),
        in_specs=[
            pl.BlockSpec((1, S, Dk), lambda b: (b, 0, 0)),   # key_vals row
            c((Q, D)),                                       # query_emb
            c((2, Dk)), c((2, D)),                           # ln_kv, ln_q
            c((n_heads, D, hd)), c((n_heads, 1, hd)),        # Wq/bq per head
            c((n_heads, Dk, hd)), c((n_heads, 1, hd)),       # Wk/bk per head
            c((n_heads, Dk, hd)), c((n_heads, 1, hd)),       # Wv/bv per head
            c((n_heads, hd, D)), c((1, D)),                  # Wo per head, bo
            c((2, D)),                                       # ln (MLP)
            c((D, D)), c((1, D)),                            # MLP linear 1
            c((D, D)), c((1, D)),                            # MLP linear 2
        ],
        out_specs=pl.BlockSpec((1, Q, D), lambda b: (b, 0, 0)),
        compiler_params=pltpu.CompilerParams(
            dimension_semantics=("parallel",)),
    )(key_vals, enc["query_emb"], enc["ln_kv"], enc["ln_q"],
      wq_h, bq_h, wk_h, bk_h, wv_h, bv_h, wo_h, enc["bo"],
      enc["ln_m"], enc["w1m"], enc["b1m"], enc["w2m"], enc["b2m"])


# ----------------------------------------------------------------------------
# Kernel 2: gMLP stack.  grid = (batch, layer); the per-row activation lives in
# a VMEM scratch accumulator across the layer axis, written out on the last
# layer.  Linear0 is pre-split into its u/v halves so no lane slicing is
# needed, and the spatial-gating transpose/Linear(Q,Q)/transpose collapses to
# one left matmul by W1.
# ----------------------------------------------------------------------------
def _gmlp_stack_kernel(x_ref, ln0_ref, w0u_ref, b0u_ref, w0v_ref, b0v_ref,
                       ln1_ref, w1_ref, b1l_ref, w2_ref, b2_ref,
                       out_ref, acc_ref):
    f32 = jnp.float32
    layer = pl.program_id(1)

    @pl.when(layer == 0)
    def _():
        acc_ref[...] = x_ref[0].astype(f32)

    x = acc_ref[...]                                         # (Q, D)
    ln0 = ln0_ref[0]                                          # (2, D)
    y = _layer_norm(x, ln0[0:1, :], ln0[1:2, :])
    u = _gelu(jnp.dot(y, w0u_ref[0], preferred_element_type=f32) + b0u_ref[0])
    v = _gelu(jnp.dot(y, w0v_ref[0], preferred_element_type=f32) + b0v_ref[0])
    ln1 = ln1_ref[0]
    v = _layer_norm(v, ln1[0:1, :], ln1[1:2, :])
    v = jnp.dot(w1_ref[0], v, preferred_element_type=f32) + b1l_ref[0]   # (Q, D)
    out = jnp.dot(u * v, w2_ref[0], preferred_element_type=f32) + b2_ref[0]
    acc_ref[...] = out + x                                    # residual

    @pl.when(layer == pl.num_programs(1) - 1)
    def _():
        out_ref[0] = acc_ref[...].astype(out_ref.dtype)


def gmlp_stack_forward(latent, gp):
    B, Q, D = latent.shape
    L = gp["w0u"].shape[0]
    per_layer = lambda shape: pl.BlockSpec(
        (1,) + shape, lambda b, l: (l,) + (0,) * len(shape))
    return pl.pallas_call(
        _gmlp_stack_kernel,
        out_shape=jax.ShapeDtypeStruct((B, Q, D), jnp.float32),
        grid=(B, L),
        in_specs=[
            pl.BlockSpec((1, Q, D), lambda b, l: (b, 0, 0)),   # latent row
            per_layer((2, D)),                                 # ln0 (gamma;beta)
            per_layer((D, D)), per_layer((1, D)),              # W0 (u half), b
            per_layer((D, D)), per_layer((1, D)),              # W0 (v half), b
            per_layer((2, D)),                                 # ln1
            per_layer((Q, Q)), per_layer((Q, 1)),              # SGU Linear(Q,Q)
            per_layer((D, D)), per_layer((1, D)),              # W2, b2
        ],
        out_specs=pl.BlockSpec((1, Q, D), lambda b, l: (b, 0, 0)),
        scratch_shapes=[pltpu.VMEM((Q, D), jnp.float32)],
        compiler_params=pltpu.CompilerParams(
            dimension_semantics=("parallel", "arbitrary")),
    )(latent, gp["ln0"], gp["w0u"], gp["b0u"], gp["w0v"], gp["b0v"],
      gp["ln1"], gp["w1"], gp["b1l"], gp["w2"], gp["b2"])


# ----------------------------------------------------------------------------
# Kernel 3: DecoderBottleneck (Reduce + LayerNorm + fused variational / cell
# heads).  HBM-bandwidth bound -> bf16 Q-major latent streaming, big batch
# tiles, one lane-dense fused head matmul.
# ----------------------------------------------------------------------------
def _decoder_bottleneck_kernel(latent_ref, w_red_ref, gamma_ref, beta_ref,
                               w_all_ref, b_all_ref, out_ref, *,
                               bottleneck_dim):
    Q = latent_ref.shape[0]

    # Reduce: transpose(2,1) -> Linear(Q, 1) folded into an unrolled per-q MAC.
    # Q-major layout => each slice is a sublane-dense (TB, S) load.
    red = latent_ref[0].astype(jnp.float32) * w_red_ref[0]
    for q in range(1, Q):
        red = red + latent_ref[q].astype(jnp.float32) * w_red_ref[q]
    # NOTE: Reduce's bias is constant along the LayerNorm axis and is exactly
    # cancelled by the mean subtraction below, so it is omitted (dead compute).

    # LayerNorm over seq_dim (eps = 1e-5, biased variance).
    mu = jnp.mean(red, axis=-1, keepdims=True)
    var = jnp.mean((red - mu) ** 2, axis=-1, keepdims=True)
    ln = (red - mu) * lax.rsqrt(var + 1e-5)
    ln = ln * gamma_ref[0, :] + beta_ref[0, :]                       # (TB, S)

    # Fused [mean | std | all cell heads] matmul, bf16 x bf16 -> f32 on the
    # MXU, written back as a single lane-dense (TB, P) store.
    head = jnp.dot(ln.astype(jnp.bfloat16), w_all_ref[...],
                   preferred_element_type=jnp.float32) + b_all_ref[0, :]

    Bo = bottleneck_dim
    col = lax.broadcasted_iota(jnp.int32, head.shape, 1)
    is_std = (col >= Bo) & (col < 2 * Bo)
    softplus = jnp.where(head > 20.0, head, jnp.log1p(jnp.exp(head)))
    # TODO(synk): Normal(mean, std).sample() in the reference forward is dead
    # compute (the sample is never used downstream), so it is omitted.
    out_ref[...] = jnp.where(is_std, softplus, head)


def _vmem_capacity_bytes():
    try:
        cap = int(pltpu.get_tpu_info().vmem_capacity_bytes)
        if cap > 0:
            return cap
    except Exception:
        pass
    return 64 * 1024 * 1024      # conservative fallback (v7x per-TC VMEM)


def _choose_batch_tile(B, Q, S, itemsize, vmem_cap):
    """Batch tile: multiple of 8, per-pipeline-buffer budget ~vmem_cap/16
    (~8 MiB on v5e/v6e, ~4 MiB on v7x), and >=2 grid steps whenever B > 8 so a
    2-TensorCore chip (v7x) can shard the 'parallel' batch axis."""
    target_bytes = max(vmem_cap // 16, 1 << 20)
    row_bytes = Q * S * itemsize
    tb = max(8, (target_bytes // row_bytes) // 8 * 8)
    if B > 8:
        half = (-(-B // 2) + 7) // 8 * 8
        tb = min(tb, half)
    if tb >= B:
        return B
    return int(tb)


def fuse_head_params(dec):
    """[mean | std | cell heads] fused and zero-padded to a lane-dense width."""
    w_all = jnp.concatenate([dec["w_mean"], dec["w_std"], dec["w_cell"]], axis=1)
    b_all = jnp.concatenate([dec["b_mean"], dec["b_std"], dec["b_cell"]], axis=1)
    n = w_all.shape[1]
    P = max(128, ((n + 127) // 128) * 128)
    pad = P - n
    if pad:
        w_all = jnp.pad(w_all, ((0, 0), (0, pad)))
        b_all = jnp.pad(b_all, ((0, 0), (0, pad)))
    return dict(
        w_red=dec["w_red"],                    # (Q,)   -> SMEM scalars
        ln_g=dec["ln_g"], ln_b=dec["ln_b"],    # (1, S)
        w_all=w_all.astype(jnp.bfloat16),      # (S, P) bf16 MXU input
        b_all=b_all,                           # (1, P) f32
    )


def decoder_bottleneck_forward(latent, fused, cell_slices, bottleneck_dim,
                               batch_tile=None, latent_dtype=jnp.bfloat16):
    B, Q, S = latent.shape
    Bo = bottleneck_dim
    P = fused["w_all"].shape[1]
    T = sum(hi - lo for (lo, hi) in cell_slices.values())

    # bf16 at the HBM boundary + Q-major layout (both are one-time XLA ops).
    latent_qm = jnp.transpose(latent, (1, 0, 2)).astype(latent_dtype)

    vmem_cap = _vmem_capacity_bytes()
    TB = batch_tile if batch_tile is not None else _choose_batch_tile(
        B, Q, S, jnp.dtype(latent_dtype).itemsize, vmem_cap)
    grid = (pl.cdiv(B, TB),)
    # ~60% of this chip's VMEM: ~76 MiB on 128-MiB chips, ~38 MiB on v7x.
    vmem_limit = int(min(vmem_cap * 3 // 5, 96 * 1024 * 1024))

    kernel = functools.partial(_decoder_bottleneck_kernel, bottleneck_dim=Bo)

    def run(single_buffer_weights):
        def const_spec(shape):
            idx = lambda i: (0,) * len(shape)
            if single_buffer_weights:
                return pl.BlockSpec(shape, idx, pipeline_mode=pl.Buffered(1))
            return pl.BlockSpec(shape, idx)

        return pl.pallas_call(
            kernel,
            out_shape=jax.ShapeDtypeStruct((B, P), jnp.float32),
            grid=grid,
            in_specs=[
                # latent: Q-major, tiled over batch -> double-buffered DMA
                pl.BlockSpec((Q, TB, S), lambda i: (0, i, 0)),
                # Reduce weights on the scalar path
                pl.BlockSpec(memory_space=pltpu.MemorySpace.SMEM),
                # resident weights (constant block index)
                const_spec((1, S)),
                const_spec((1, S)),
                const_spec((S, P)),
                const_spec((1, P)),
            ],
            out_specs=pl.BlockSpec((TB, P), lambda i: (i, 0)),
            compiler_params=pltpu.CompilerParams(
                dimension_semantics=("parallel",),
                vmem_limit_bytes=vmem_limit,
            ),
        )(latent_qm, fused["w_red"], fused["ln_g"], fused["ln_b"],
          fused["w_all"], fused["b_all"])

    try:
        out = run(True)    # single-buffered resident weights (VMEM saving, v7x)
    except Exception:
        # TODO(synk): pipeline_mode=pl.Buffered(1) not accepted by this JAX /
        # Mosaic build -- fall back to default double-buffered residents.
        out = run(False)

    enc_mean = out[:, :Bo]
    enc_std = out[:, Bo:2 * Bo]
    cell_cat = out[:, 2 * Bo:2 * Bo + T]
    cell_pred = {}
    for k, (lo, hi) in cell_slices.items():
        v = cell_cat[:, lo:hi]
        if hi - lo == 1:
            v = jnp.squeeze(v, axis=-1)     # matches torch.squeeze on (B, 1)
        cell_pred[k] = v
    gene_pred = 0.0
    return gene_pred, cell_pred, enc_mean, enc_std


# ----------------------------------------------------------------------------
# Embedding glue + full GatedMLP forward (variational path)
# ----------------------------------------------------------------------------
def gene_embedding(emb, gene_ids, gene_vals):
    ge = emb["gene_emb"][gene_ids]                   # (B, N, seq_dim)
    w = emb["gene_val_w"][gene_ids]                  # (B, N, 1)
    b = emb["gene_val_b"][gene_ids]                  # (B, N, 1)
    return (gene_vals[..., None] * w + b) * ge


def gated_mlp_forward(params, gene_ids, gene_target_ids, cell_prop_target_ids,
                      gene_vals, cell_slices, bottleneck_dim, n_heads):
    # embeddings: data-dependent gathers -> plain-JAX glue feeding the kernels.
    key_vals = gene_embedding(params["emb"], gene_ids, gene_vals)
    gene_query = params["emb"]["gene_emb"][gene_target_ids]        # noqa: F841
    cell_query = params["emb"]["cell_emb"][cell_prop_target_ids]   # noqa: F841
    # gene_query / cell_query only feed the non-variational Decoder; the
    # variational DecoderBottleneck path never consumes them.

    latent = cross_attn_forward(key_vals, params["enc"], n_heads)   # kernel 1
    latent = gmlp_stack_forward(latent, params["gmlp"])             # kernel 2
    gene_pred, cell_pred, enc_mean, enc_std = decoder_bottleneck_forward(
        latent, params["dec_fused"], cell_slices, bottleneck_dim)   # kernel 3

    outputs = (gene_pred, cell_pred, (enc_mean, enc_std))
    aux = dict(key_vals=key_vals, latent=latent)
    return outputs, aux


# ----------------------------------------------------------------------------
# Deterministic parameter construction (shapes follow the PyTorch __init__s)
# ----------------------------------------------------------------------------
def make_params(key, *, seq_len, seq_dim, query_len, query_dim, n_heads,
                n_layers, bottleneck_dim, cell_properties):
    assert query_dim == seq_dim, "gMLP / decoder require query_dim == seq_dim"
    assert query_dim % n_heads == 0
    D, Dk, Q, L, Bo = query_dim, seq_dim, query_len, n_layers, bottleneck_dim

    keys = iter(jax.random.split(key, 96))

    def nrm(shape, s=0.1):
        return s * jax.random.normal(next(keys), shape, jnp.float32)

    def ln_pair(d):   # rows: [gamma; beta]
        return jnp.stack([1.0 + nrm((d,), 0.05), nrm((d,), 0.05)], axis=0)

    sizes = [(k, len(p["values"]) if p["discrete"] else 1)
             for k, p in cell_properties.items()]
    total = sum(n for _, n in sizes)
    cell_slices, off = {}, 0
    for k, n in sizes:
        cell_slices[k] = (off, off + n)
        off += n

    emb = dict(
        gene_emb=nrm((seq_len + 1, Dk), 0.3).at[seq_len].set(0.0),  # padding row
        gene_val_w=jnp.ones((seq_len + 1, 1), jnp.float32),
        gene_val_b=jnp.zeros((seq_len + 1, 1), jnp.float32),
        cell_emb=nrm((len(cell_properties) + 1, Dk), 0.3),
    )

    enc = dict(
        query_emb=nrm((Q, D), 1.0),
        ln_kv=ln_pair(Dk), ln_q=ln_pair(D),
        wq=nrm((D, D)), bq=nrm((1, D)),
        wk=nrm((Dk, D)), bk=nrm((1, D)),
        wv=nrm((Dk, D)), bv=nrm((1, D)),
        wo=nrm((D, D)), bo=nrm((1, D)),
        ln_m=ln_pair(D),
        w1m=nrm((D, D)), b1m=nrm((1, D)),
        w2m=nrm((D, D)), b2m=nrm((1, D)),
    )

    gmlp = dict(
        ln0=jnp.stack([ln_pair(Dk) for _ in range(L)]),      # (L, 2, D)
        w0u=nrm((L, Dk, Dk)), b0u=nrm((L, 1, Dk)),
        w0v=nrm((L, Dk, Dk)), b0v=nrm((L, 1, Dk)),
        ln1=jnp.stack([ln_pair(Dk) for _ in range(L)]),
        w1=nrm((L, Q, Q), 0.02),                  # xavier(gain=0.05)-style init
        b1l=jnp.ones((L, Q, 1), jnp.float32),     # nn.init.ones_(linear1.bias)
        w2=nrm((L, Dk, Dk)), b2=nrm((L, 1, Dk)),
    )

    dec = dict(
        w_red=nrm((Q,), 0.2),       # Reduce.linear.weight (1, Q) flattened
        b_red=nrm((), 0.2),         # Reduce.linear.bias (cancelled by the LN)
        ln_g=1.0 + nrm((1, Dk), 0.05), ln_b=nrm((1, Dk), 0.05),
        w_mean=nrm((Dk, Bo)), b_mean=nrm((1, Bo)),
        w_std=nrm((Dk, Bo)), b_std=nrm((1, Bo)),
        w_cell=nrm((Dk, total)), b_cell=nrm((1, total)),
    )

    params = dict(emb=emb, enc=enc, gmlp=gmlp, dec=dec,
                  dec_fused=fuse_head_params(dec))
    return params, cell_slices


# ----------------------------------------------------------------------------
# Pure-JAX references (correctness checks)
# ----------------------------------------------------------------------------
def reference_cross_attn(key_vals, enc, n_heads):
    B, S, Dk = key_vals.shape
    qe = enc["query_emb"]
    Q, D = qe.shape
    hd = D // n_heads
    nk = _layer_norm(key_vals, enc["ln_kv"][0:1, :], enc["ln_kv"][1:2, :])
    nq = _layer_norm(qe, enc["ln_q"][0:1, :], enc["ln_q"][1:2, :])
    q = (nq @ enc["wq"] + enc["bq"]).reshape(Q, n_heads, hd)
    k = (jnp.einsum("bsd,de->bse", nk, enc["wk"]) + enc["bk"]).reshape(B, S, n_heads, hd)
    v = (jnp.einsum("bsd,de->bse", nk, enc["wv"]) + enc["bv"]).reshape(B, S, n_heads, hd)
    s = jnp.einsum("qhd,bshd->bhqs", q, k) / jnp.sqrt(float(hd))
    p = jax.nn.softmax(s, axis=-1)
    o = jnp.einsum("bhqs,bshd->bqhd", p, v).reshape(B, Q, D)
    attn = o @ enc["wo"] + enc["bo"]
    lat = attn + qe[None]
    m = _layer_norm(lat, enc["ln_m"][0:1, :], enc["ln_m"][1:2, :])
    m = _gelu(m @ enc["w1m"] + enc["b1m"]) @ enc["w2m"] + enc["b2m"]
    return m + lat


def reference_gmlp(x, gp):
    L = gp["w0u"].shape[0]
    for l in range(L):
        y = _layer_norm(x, gp["ln0"][l, 0:1, :], gp["ln0"][l, 1:2, :])
        u = _gelu(y @ gp["w0u"][l] + gp["b0u"][l])
        v = _gelu(y @ gp["w0v"][l] + gp["b0v"][l])
        v = _layer_norm(v, gp["ln1"][l, 0:1, :], gp["ln1"][l, 1:2, :])
        v = jnp.einsum("qp,bpd->bqd", gp["w1"][l], v) + gp["b1l"][l][None]
        x = (u * v) @ gp["w2"][l] + gp["b2"][l] + x
    return x


def reference_decoder(latent, dec, latent_dtype=jnp.bfloat16):
    # mirrors the kernel's dtype choices (bf16 latent / bf16 MXU inputs) so the
    # check measures implementation error, not quantization error.
    lat = latent.astype(latent_dtype).astype(jnp.float32)
    red = jnp.einsum("bqs,q->bs", lat, dec["w_red"]) + dec["b_red"]
    mu = jnp.mean(red, axis=-1, keepdims=True)
    var = jnp.mean((red - mu) ** 2, axis=-1, keepdims=True)
    ln = (red - mu) * lax.rsqrt(var + 1e-5)
    ln = ln * dec["ln_g"][0] + dec["ln_b"][0]

    def head(w, b):
        return jnp.dot(ln.astype(jnp.bfloat16), w.astype(jnp.bfloat16),
                       preferred_element_type=jnp.float32) + b

    em = head(dec["w_mean"], dec["b_mean"])
    es = jax.nn.softplus(head(dec["w_std"], dec["b_std"]))
    cc = head(dec["w_cell"], dec["b_cell"])
    return em, es, cc


# ----------------------------------------------------------------------------
if __name__ == "__main__":
    # Small shapes consistent with the module.
    batch = 16
    seq_len = 48            # gene vocabulary size
    n_input_genes = 24      # observed genes per cell (key/value length)
    n_target_genes = 4
    seq_dim = 32
    query_len = 8
    query_dim = 32          # must equal seq_dim
    n_heads = 4
    n_layers = 2
    bottleneck_dim = 16
    cell_properties = {
        "cell_type": {"discrete": True, "values": ["A", "B", "C"]},
        "age": {"discrete": False, "values": None},
    }

    key = jax.random.PRNGKey(0)
    k_params, k_ids, k_vals, k_tids, k_cids = jax.random.split(key, 5)

    params, cell_slices = make_params(
        k_params, seq_len=seq_len, seq_dim=seq_dim, query_len=query_len,
        query_dim=query_dim, n_heads=n_heads, n_layers=n_layers,
        bottleneck_dim=bottleneck_dim, cell_properties=cell_properties)

    gene_ids = jax.random.randint(k_ids, (batch, n_input_genes), 0, seq_len)
    gene_vals = jax.random.uniform(k_vals, (batch, n_input_genes),
                                   jnp.float32, 0.0, 2.0)
    gene_target_ids = jax.random.randint(k_tids, (batch, n_target_genes), 0, seq_len)
    n_props = len(cell_properties)
    cell_prop_target_ids = jax.random.randint(k_cids, (batch, n_props), 0, n_props)

    (gene_pred, cell_pred, (enc_mean, enc_std)), aux = gated_mlp_forward(
        params, gene_ids, gene_target_ids, cell_prop_target_ids, gene_vals,
        cell_slices, bottleneck_dim, n_heads)
    jax.block_until_ready((enc_mean, enc_std,
                           cell_pred["cell_type"], cell_pred["age"]))

    # ---- correctness checks against pure-JAX references --------------------
    ref_lat = reference_cross_attn(aux["key_vals"], params["enc"], n_heads)
    ref_lat = reference_gmlp(ref_lat, params["gmlp"])
    assert jnp.allclose(aux["latent"], ref_lat, atol=1e-3, rtol=1e-3), \
        float(jnp.max(jnp.abs(aux["latent"] - ref_lat)))

    em_ref, es_ref, cc_ref = reference_decoder(aux["latent"], params["dec"])
    assert jnp.allclose(enc_mean, em_ref, atol=1e-3, rtol=1e-3)
    assert jnp.allclose(enc_std, es_ref, atol=1e-3, rtol=1e-3)
    assert jnp.allclose(cell_pred["cell_type"], cc_ref[:, 0:3], atol=1e-3, rtol=1e-3)
    assert jnp.allclose(cell_pred["age"], cc_ref[:, 3], atol=1e-3, rtol=1e-3)
    assert gene_pred == 0.0

    print("KERNEL_OK")
</pallas_src>

<mosaic_0001>
module attributes {stable_mosaic.version = 11 : i64} {
  func.func @_cross_attn_kernel(%arg0: i32, %arg1: memref<1x24x32xf32, #tpu.memory_space<vmem>>, %arg2: memref<8x32xf32, #tpu.memory_space<vmem>>, %arg3: memref<2x32xf32, #tpu.memory_space<vmem>>, %arg4: memref<2x32xf32, #tpu.memory_space<vmem>>, %arg5: memref<4x32x8xf32, #tpu.memory_space<vmem>>, %arg6: memref<4x1x8xf32, #tpu.memory_space<vmem>>, %arg7: memref<4x32x8xf32, #tpu.memory_space<vmem>>, %arg8: memref<4x1x8xf32, #tpu.memory_space<vmem>>, %arg9: memref<4x32x8xf32, #tpu.memory_space<vmem>>, %arg10: memref<4x1x8xf32, #tpu.memory_space<vmem>>, %arg11: memref<4x8x32xf32, #tpu.memory_space<vmem>>, %arg12: memref<1x32xf32, #tpu.memory_space<vmem>>, %arg13: memref<2x32xf32, #tpu.memory_space<vmem>>, %arg14: memref<32x32xf32, #tpu.memory_space<vmem>>, %arg15: memref<1x32xf32, #tpu.memory_space<vmem>>, %arg16: memref<32x32xf32, #tpu.memory_space<vmem>>, %arg17: memref<1x32xf32, #tpu.memory_space<vmem>>, %arg18: memref<1x8x32xf32, #tpu.memory_space<vmem>>) attributes {dimension_semantics = [#tpu.dimension_semantics<parallel>], iteration_bounds = array<i64: 16>, scalar_prefetch = 0 : i64, scratch_operands = 0 : i64, tpu.core_type = #tpu.core_type<tc>, window_params = [{transform_indices = @transform_0, window_bounds = array<i64: 1, 24, 32>}, {pipeline_mode = #tpu.pipeline_mode<synchronous>, transform_indices = @transform_1, window_bounds = array<i64: 8, 32>}, {pipeline_mode = #tpu.pipeline_mode<synchronous>, transform_indices = @transform_2, window_bounds = array<i64: 2, 32>}, {pipeline_mode = #tpu.pipeline_mode<synchronous>, transform_indices = @transform_3, window_bounds = array<i64: 2, 32>}, {pipeline_mode = #tpu.pipeline_mode<synchronous>, transform_indices = @transform_4, window_bounds = array<i64: 4, 32, 8>}, {pipeline_mode = #tpu.pipeline_mode<synchronous>, transform_indices = @transform_5, window_bounds = array<i64: 4, 1, 8>}, {pipeline_mode = #tpu.pipeline_mode<synchronous>, transform_indices = @transform_6, window_bounds = array<i64: 4, 32, 8>}, {pipeline_mode = #tpu.pipeline_mode<synchronous>, transform_indices = @transform_7, window_bounds = array<i64: 4, 1, 8>}, {pipeline_mode = #tpu.pipeline_mode<synchronous>, transform_indices = @transform_8, window_bounds = array<i64: 4, 32, 8>}, {pipeline_mode = #tpu.pipeline_mode<synchronous>, transform_indices = @transform_9, window_bounds = array<i64: 4, 1, 8>}, {pipeline_mode = #tpu.pipeline_mode<synchronous>, transform_indices = @transform_10, window_bounds = array<i64: 4, 8, 32>}, {pipeline_mode = #tpu.pipeline_mode<synchronous>, transform_indices = @transform_11, window_bounds = array<i64: 1, 32>}, {pipeline_mode = #tpu.pipeline_mode<synchronous>, transform_indices = @transform_12, window_bounds = array<i64: 2, 32>}, {pipeline_mode = #tpu.pipeline_mode<synchronous>, transform_indices = @transform_13, window_bounds = array<i64: 32, 32>}, {pipeline_mode = #tpu.pipeline_mode<synchronous>, transform_indices = @transform_14, window_bounds = array<i64: 1, 32>}, {pipeline_mode = #tpu.pipeline_mode<synchronous>, transform_indices = @transform_15, window_bounds = array<i64: 32, 32>}, {pipeline_mode = #tpu.pipeline_mode<synchronous>, transform_indices = @transform_16, window_bounds = array<i64: 1, 32>}, {transform_indices = @transform_17, window_bounds = array<i64: 1, 8, 32>}]} {
    %c0 = arith.constant 0 : index
    %c0_0 = arith.constant 0 : index
    %c0_1 = arith.constant 0 : index
    %0 = vector.load %arg1[%c0, %c0_0, %c0_1] : memref<1x24x32xf32, #tpu.memory_space<vmem>>, vector<1x24x32xf32>
    %1 = vector.shape_cast %0 : vector<1x24x32xf32> to vector<24x32xf32>
    %c0_2 = arith.constant 0 : index
    %c0_3 = arith.constant 0 : index
    %2 = vector.load %arg2[%c0_2, %c0_3] : memref<8x32xf32, #tpu.memory_space<vmem>>, vector<8x32xf32>
    %c0_4 = arith.constant 0 : index
    %c0_5 = arith.constant 0 : index
    %3 = vector.load %arg3[%c0_4, %c0_5] : memref<2x32xf32, #tpu.memory_space<vmem>>, vector<1x32xf32>
    %c1 = arith.constant 1 : index
    %c0_6 = arith.constant 0 : index
    %4 = vector.load %arg3[%c1, %c0_6] : memref<2x32xf32, #tpu.memory_space<vmem>>, vector<1x32xf32>
    %cst = arith.constant dense<0.000000e+00> : vector<24xf32>
    %5 = vector.multi_reduction <add>, %1, %cst [1] : vector<24x32xf32> to vector<24xf32>
    %6 = vector.shape_cast %5 : vector<24xf32> to vector<24x1xf32>
    %cst_7 = arith.constant 3.200000e+01 : f32
    %7 = vector.broadcast %cst_7 : f32 to vector<24x1xf32>
    %8 = arith.divf %6, %7 : vector<24x1xf32>
    %9 = vector.broadcast %8 : vector<24x1xf32> to vector<24x32xf32>
    %10 = arith.subf %1, %9 : vector<24x32xf32>
    %11 = arith.mulf %10, %10 : vector<24x32xf32>
    %cst_8 = arith.constant dense<0.000000e+00> : vector<24xf32>
    %12 = vector.multi_reduction <add>, %11, %cst_8 [1] : vector<24x32xf32> to vector<24xf32>
    %13 = vector.shape_cast %12 : vector<24xf32> to vector<24x1xf32>
    %cst_9 = arith.constant 3.200000e+01 : f32
    %14 = vector.broadcast %cst_9 : f32 to vector<24x1xf32>
    %15 = arith.divf %13, %14 : vector<24x1xf32>
    %16 = vector.broadcast %8 : vector<24x1xf32> to vector<24x32xf32>
    %17 = arith.subf %1, %16 : vector<24x32xf32>
    %cst_10 = arith.constant 9.99999974E-6 : f32
    %18 = vector.broadcast %cst_10 : f32 to vector<24x1xf32>
    %19 = arith.addf %15, %18 : vector<24x1xf32>
    %20 = math.rsqrt %19 : vector<24x1xf32>
    %21 = vector.broadcast %20 : vector<24x1xf32> to vector<24x32xf32>
    %22 = arith.mulf %17, %21 : vector<24x32xf32>
    %23 = vector.broadcast %3 : vector<1x32xf32> to vector<24x32xf32>
    %24 = arith.mulf %22, %23 : vector<24x32xf32>
    %25 = vector.broadcast %4 : vector<1x32xf32> to vector<24x32xf32>
    %26 = arith.addf %24, %25 : vector<24x32xf32>
    %c0_11 = arith.constant 0 : index
    %c0_12 = arith.constant 0 : index
    %27 = vector.load %arg4[%c0_11, %c0_12] : memref<2x32xf32, #tpu.memory_space<vmem>>, vector<1x32xf32>
    %c1_13 = arith.constant 1 : index
    %c0_14 = arith.constant 0 : index
    %28 = vector.load %arg4[%c1_13, %c0_14] : memref<2x32xf32, #tpu.memory_space<vmem>>, vector<1x32xf32>
    %cst_15 = arith.constant dense<0.000000e+00> : vector<8xf32>
    %29 = vector.multi_reduction <add>, %2, %cst_15 [1] : vector<8x32xf32> to vector<8xf32>
    %30 = vector.shape_cast %29 : vector<8xf32> to vector<8x1xf32>
    %cst_16 = arith.constant 3.200000e+01 : f32
    %31 = vector.broadcast %cst_16 : f32 to vector<8x1xf32>
    %32 = arith.divf %30, %31 : vector<8x1xf32>
    %33 = vector.broadcast %32 : vector<8x1xf32> to vector<8x32xf32>
    %34 = arith.subf %2, %33 : vector<8x32xf32>
    %35 = arith.mulf %34, %34 : vector<8x32xf32>
    %cst_17 = arith.constant dense<0.000000e+00> : vector<8xf32>
    %36 = vector.multi_reduction <add>, %35, %cst_17 [1] : vector<8x32xf32> to vector<8xf32>
    %37 = vector.shape_cast %36 : vector<8xf32> to vector<8x1xf32>
    %cst_18 = arith.constant 3.200000e+01 : f32
    %38 = vector.broadcast %cst_18 : f32 to vector<8x1xf32>
    %39 = arith.divf %37, %38 : vector<8x1xf32>
    %40 = vector.broadcast %32 : vector<8x1xf32> to vector<8x32xf32>
    %41 = arith.subf %2, %40 : vector<8x32xf32>
    %cst_19 = arith.constant 9.99999974E-6 : f32
    %42 = vector.broadcast %cst_19 : f32 to vector<8x1xf32>
    %43 = arith.addf %39, %42 : vector<8x1xf32>
    %44 = math.rsqrt %43 : vector<8x1xf32>
    %45 = vector.broadcast %44 : vector<8x1xf32> to vector<8x32xf32>
    %46 = arith.mulf %41, %45 : vector<8x32xf32>
    %47 = vector.broadcast %27 : vector<1x32xf32> to vector<8x32xf32>
    %48 = arith.mulf %46, %47 : vector<8x32xf32>
    %49 = vector.broadcast %28 : vector<1x32xf32> to vector<8x32xf32>
    %50 = arith.addf %48, %49 : vector<8x32xf32>
    %cst_20 = arith.constant 0.000000e+00 : f32
    %51 = vector.broadcast %cst_20 : f32 to vector<8x32xf32>
    %c0_21 = arith.constant 0 : index
    %c0_22 = arith.constant 0 : index
    %c0_23 = arith.constant 0 : index
    %52 = vector.load %arg5[%c0_21, %c0_22, %c0_23] : memref<4x32x8xf32, #tpu.memory_space<vmem>>, vector<1x32x8xf32>
    %53 = vector.shape_cast %52 : vector<1x32x8xf32> to vector<32x8xf32>
    %cst_24 = arith.constant dense<0.000000e+00> : vector<8x8xf32>
    %54 = tpu.matmul %50, %53, %cst_24 {dimension_numbers = #tpu.dot_dimension_numbers<[1], [0], [0], [1], [0, 0, 1, 1], [], []>} : vector<8x32xf32>, vector<32x8xf32>, vector<8x8xf32> -> vector<8x8xf32>
    %c0_25 = arith.constant 0 : index
    %c0_26 = arith.constant 0 : index
    %c0_27 = arith.constant 0 : index
    %55 = vector.load %arg6[%c0_25, %c0_26, %c0_27] : memref<4x1x8xf32, #tpu.memory_space<vmem>>, vector<1x1x8xf32>
    %56 = vector.shape_cast %55 : vector<1x1x8xf32> to vector<1x8xf32>
    %57 = vector.broadcast %56 : vector<1x8xf32> to vector<8x8xf32>
    %58 = arith.addf %54, %57 : vector<8x8xf32>
    %cst_28 = arith.constant 0.353553385 : f32
    %59 = vector.broadcast %cst_28 : f32 to vector<8x8xf32>
    %60 = arith.mulf %58, %59 : vector<8x8xf32>
    %c0_29 = arith.constant 0 : index
    %c0_30 = arith.constant 0 : index
    %c0_31 = arith.constant 0 : index
    %61 = vector.load %arg7[%c0_29, %c0_30, %c0_31] : memref<4x32x8xf32, #tpu.memory_space<vmem>>, vector<1x32x8xf32>
    %62 = vector.shape_cast %61 : vector<1x32x8xf32> to vector<32x8xf32>
    %cst_32 = arith.constant dense<0.000000e+00> : vector<24x8xf32>
    %63 = tpu.matmul %26, %62, %cst_32 {dimension_numbers = #tpu.dot_dimension_numbers<[1], [0], [0], [1], [0, 0, 1, 1], [], []>} : vector<24x32xf32>, vector<32x8xf32>, vector<24x8xf32> -> vector<24x8xf32>
    %c0_33 = arith.constant 0 : index
    %c0_34 = arith.constant 0 : index
    %c0_35 = arith.constant 0 : index
    %64 = vector.load %arg8[%c0_33, %c0_34, %c0_35] : memref<4x1x8xf32, #tpu.memory_space<vmem>>, vector<1x1x8xf32>
    %65 = vector.shape_cast %64 : vector<1x1x8xf32> to vector<1x8xf32>
    %66 = vector.broadcast %65 : vector<1x8xf32> to vector<24x8xf32>
    %67 = arith.addf %63, %66 : vector<24x8xf32>
    %c0_36 = arith.constant 0 : index
    %c0_37 = arith.constant 0 : index
    %c0_38 = arith.constant 0 : index
    %68 = vector.load %arg9[%c0_36, %c0_37, %c0_38] : memref<4x32x8xf32, #tpu.memory_space<vmem>>, vector<1x32x8xf32>
    %69 = vector.shape_cast %68 : vector<1x32x8xf32> to vector<32x8xf32>
    %cst_39 = arith.constant dense<0.000000e+00> : vector<24x8xf32>
    %70 = tpu.matmul %26, %69, %cst_39 {dimension_numbers = #tpu.dot_dimension_numbers<[1], [0], [0], [1], [0, 0, 1, 1], [], []>} : vector<24x32xf32>, vector<32x8xf32>, vector<24x8xf32> -> vector<24x8xf32>
    %c0_40 = arith.constant 0 : index
    %c0_41 = arith.constant 0 : index
    %c0_42 = arith.constant 0 : index
    %71 = vector.load %arg10[%c0_40, %c0_41, %c0_42] : memref<4x1x8xf32, #tpu.memory_space<vmem>>, vector<1x1x8xf32>
    %72 = vector.shape_cast %71 : vector<1x1x8xf32> to vector<1x8xf32>
    %73 = vector.broadcast %72 : vector<1x8xf32> to vector<24x8xf32>
    %74 = arith.addf %70, %73 : vector<24x8xf32>
    %75 = tpu.transpose %67, [1, 0] : vector<24x8xf32> -> vector<8x24xf32>
    %cst_43 = arith.constant dense<0.000000e+00> : vector<8x24xf32>
    %76 = tpu.matmul %60, %75, %cst_43 {dimension_numbers = #tpu.dot_dimension_numbers<[1], [0], [0], [1], [0, 0, 1, 1], [], []>} : vector<8x8xf32>, vector<8x24xf32>, vector<8x24xf32> -> vector<8x24xf32>
    %cst_44 = arith.constant dense<0xFF800000> : vector<8xf32>
    %77 = vector.multi_reduction <maximumf>, %76, %cst_44 [1] : vector<8x24xf32> to vector<8xf32>
    %78 = vector.shape_cast %77 : vector<8xf32> to vector<8x1xf32>
    %79 = vector.broadcast %78 : vector<8x1xf32> to vector<8x24xf32>
    %80 = arith.subf %76, %79 : vector<8x24xf32>
    %81 = math.exp %80 : vector<8x24xf32>
    %cst_45 = arith.constant dense<0.000000e+00> : vector<8xf32>
    %82 = vector.multi_reduction <add>, %81, %cst_45 [1] : vector<8x24xf32> to vector<8xf32>
    %83 = vector.shape_cast %82 : vector<8xf32> to vector<8x1xf32>
    %84 = vector.broadcast %83 : vector<8x1xf32> to vector<8x24xf32>
    %85 = arith.divf %81, %84 : vector<8x24xf32>
    %cst_46 = arith.constant dense<0.000000e+00> : vector<8x8xf32>
    %86 = tpu.matmul %85, %74, %cst_46 {dimension_numbers = #tpu.dot_dimension_numbers<[1], [0], [0], [1], [0, 0, 1, 1], [], []>} : vector<8x24xf32>, vector<24x8xf32>, vector<8x8xf32> -> vector<8x8xf32>
    %c0_47 = arith.constant 0 : index
    %c0_48 = arith.constant 0 : index
    %c0_49 = arith.constant 0 : index
    %87 = vector.load %arg11[%c0_47, %c0_48, %c0_49] : memref<4x8x32xf32, #tpu.memory_space<vmem>>, vector<1x8x32xf32>
    %88 = vector.shape_cast %87 : vector<1x8x32xf32> to vector<8x32xf32>
    %cst_50 = arith.constant dense<0.000000e+00> : vector<8x32xf32>
    %89 = tpu.matmul %86, %88, %cst_50 {dimension_numbers = #tpu.dot_dimension_numbers<[1], [0], [0], [1], [0, 0, 1, 1], [], []>} : vector<8x8xf32>, vector<8x32xf32>, vector<8x32xf32> -> vector<8x32xf32>
    %90 = arith.addf %51, %89 : vector<8x32xf32>
    %c1_51 = arith.constant 1 : index
    %c0_52 = arith.constant 0 : index
    %c0_53 = arith.constant 0 : index
    %91 = vector.load %arg5[%c1_51, %c0_52, %c0_53] : memref<4x32x8xf32, #tpu.memory_space<vmem>>, vector<1x32x8xf32>
    %92 = vector.shape_cast %91 : vector<1x32x8xf32> to vector<32x8xf32>
    %cst_54 = arith.constant dense<0.000000e+00> : vector<8x8xf32>
    %93 = tpu.matmul %50, %92, %cst_54 {dimension_numbers = #tpu.dot_dimension_numbers<[1], [0], [0], [1], [0, 0, 1, 1], [], []>} : vector<8x32xf32>, vector<32x8xf32>, vector<8x8xf32> -> vector<8x8xf32>
    %c1_55 = arith.constant 1 : index
    %c0_56 = arith.constant 0 : index
    %c0_57 = arith.constant 0 : index
    %94 = vector.load %arg6[%c1_55, %c0_56, %c0_57] : memref<4x1x8xf32, #tpu.memory_space<vmem>>, vector<1x1x8xf32>
    %95 = vector.shape_cast %94 : vector<1x1x8xf32> to vector<1x8xf32>
    %96 = vector.broadcast %95 : vector<1x8xf32> to vector<8x8xf32>
    %97 = arith.addf %93, %96 : vector<8x8xf32>
    %cst_58 = arith.constant 0.353553385 : f32
    %98 = vector.broadcast %cst_58 : f32 to vector<8x8xf32>
    %99 = arith.mulf %97, %98 : vector<8x8xf32>
    %c1_59 = arith.constant 1 : index
    %c0_60 = arith.constant 0 : index
    %c0_61 = arith.constant 0 : index
    %100 = vector.load %arg7[%c1_59, %c0_60, %c0_61] : memref<4x32x8xf32, #tpu.memory_space<vmem>>, vector<1x32x8xf32>
    %101 = vector.shape_cast %100 : vector<1x32x8xf32> to vector<32x8xf32>
    %cst_62 = arith.constant dense<0.000000e+00> : vector<24x8xf32>
    %102 = tpu.matmul %26, %101, %cst_62 {dimension_numbers = #tpu.dot_dimension_numbers<[1], [0], [0], [1], [0, 0, 1, 1], [], []>} : vector<24x32xf32>, vector<32x8xf32>, vector<24x8xf32> -> vector<24x8xf32>
    %c1_63 = arith.constant 1 : index
    %c0_64 = arith.constant 0 : index
    %c0_65 = arith.constant 0 : index
    %103 = vector.load %arg8[%c1_63, %c0_64, %c0_65] : memref<4x1x8xf32, #tpu.memory_space<vmem>>, vector<1x1x8xf32>
    %104 = vector.shape_cast %103 : vector<1x1x8xf32> to vector<1x8xf32>
    %105 = vector.broadcast %104 : vector<1x8xf32> to vector<24x8xf32>
    %106 = arith.addf %102, %105 : vector<24x8xf32>
    %c1_66 = arith.constant 1 : index
    %c0_67 = arith.constant 0 : index
    %c0_68 = arith.constant 0 : index
    %107 = vector.load %arg9[%c1_66, %c0_67, %c0_68] : memref<4x32x8xf32, #tpu.memory_space<vmem>>, vector<1x32x8xf32>
    %108 = vector.shape_cast %107 : vector<1x32x8xf32> to vector<32x8xf32>
    %cst_69 = arith.constant dense<0.000000e+00> : vector<24x8xf32>
    %109 = tpu.matmul %26, %108, %cst_69 {dimension_numbers = #tpu.dot_dimension_numbers<[1], [0], [0], [1], [0, 0, 1, 1], [], []>} : vector<24x32xf32>, vector<32x8xf32>, vector<24x8xf32> -> vector<24x8xf32>
    %c1_70 = arith.constant 1 : index
    %c0_71 = arith.constant 0 : index
    %c0_72 = arith.constant 0 : index
    %110 = vector.load %arg10[%c1_70, %c0_71, %c0_72] : memref<4x1x8xf32, #tpu.memory_space<vmem>>, vector<1x1x8xf32>
    %111 = vector.shape_cast %110 : vector<1x1x8xf32> to vector<1x8xf32>
    %112 = vector.broadcast %111 : vector<1x8xf32> to vector<24x8xf32>
    %113 = arith.addf %109, %112 : vector<24x8xf32>
    %114 = tpu.transpose %106, [1, 0] : vector<24x8xf32> -> vector<8x24xf32>
    %cst_73 = arith.constant dense<0.000000e+00> : vector<8x24xf32>
    %115 = tpu.matmul %99, %114, %cst_73 {dimension_numbers = #tpu.dot_dimension_numbers<[1], [0], [0], [1], [0, 0, 1, 1], [], []>} : vector<8x8xf32>, vector<8x24xf32>, vector<8x24xf32> -> vector<8x24xf32>
    %cst_74 = arith.constant dense<0xFF800000> : vector<8xf32>
    %116 = vector.multi_reduction <maximumf>, %115, %cst_74 [1] : vector<8x24xf32> to vector<8xf32>
    %117 = vector.shape_cast %116 : vector<8xf32> to vector<8x1xf32>
    %118 = vector.broadcast %117 : vector<8x1xf32> to vector<8x24xf32>
    %119 = arith.subf %115, %118 : vector<8x24xf32>
    %120 = math.exp %119 : vector<8x24xf32>
    %cst_75 = arith.constant dense<0.000000e+00> : vector<8xf32>
    %121 = vector.multi_reduction <add>, %120, %cst_75 [1] : vector<8x24xf32> to vector<8xf32>
    %122 = vector.shape_cast %121 : vector<8xf32> to vector<8x1xf32>
    %123 = vector.broadcast %122 : vector<8x1xf32> to vector<8x24xf32>
    %124 = arith.divf %120, %123 : vector<8x24xf32>
    %cst_76 = arith.constant dense<0.000000e+00> : vector<8x8xf32>
    %125 = tpu.matmul %124, %113, %cst_76 {dimension_numbers = #tpu.dot_dimension_numbers<[1], [0], [0], [1], [0, 0, 1, 1], [], []>} : vector<8x24xf32>, vector<24x8xf32>, vector<8x8xf32> -> vector<8x8xf32>
    %c1_77 = arith.constant 1 : index
    %c0_78 = arith.constant 0 : index
    %c0_79 = arith.constant 0 : index
    %126 = vector.load %arg11[%c1_77, %c0_78, %c0_79] : memref<4x8x32xf32, #tpu.memory_space<vmem>>, vector<1x8x32xf32>
    %127 = vector.shape_cast %126 : vector<1x8x32xf32> to vector<8x32xf32>
    %cst_80 = arith.constant dense<0.000000e+00> : vector<8x32xf32>
    %128 = tpu.matmul %125, %127, %cst_80 {dimension_numbers = #tpu.dot_dimension_numbers<[1], [0], [0], [1], [0, 0, 1, 1], [], []>} : vector<8x8xf32>, vector<8x32xf32>, vector<8x32xf32> -> vector<8x32xf32>
    %129 = arith.addf %90, %128 : vector<8x32xf32>
    %c2 = arith.constant 2 : index
    %c0_81 = arith.constant 0 : index
    %c0_82 = arith.constant 0 : index
    %130 = vector.load %arg5[%c2, %c0_81, %c0_82] : memref<4x32x8xf32, #tpu.memory_space<vmem>>, vector<1x32x8xf32>
    %131 = vector.shape_cast %130 : vector<1x32x8xf32> to vector<32x8xf32>
    %cst_83 = arith.constant dense<0.000000e+00> : vector<8x8xf32>
    %132 = tpu.matmul %50, %131, %cst_83 {dimension_numbers = #tpu.dot_dimension_numbers<[1], [0], [0], [1], [0, 0, 1, 1], [], []>} : vector<8x32xf32>, vector<32x8xf32>, vector<8x8xf32> -> vector<8x8xf32>
    %c2_84 = arith.constant 2 : index
    %c0_85 = arith.constant 0 : index
    %c0_86 = arith.constant 0 : index
    %133 = vector.load %arg6[%c2_84, %c0_85, %c0_86] : memref<4x1x8xf32, #tpu.memory_space<vmem>>, vector<1x1x8xf32>
    %134 = vector.shape_cast %133 : vector<1x1x8xf32> to vector<1x8xf32>
    %135 = vector.broadcast %134 : vector<1x8xf32> to vector<8x8xf32>
    %136 = arith.addf %132, %135 : vector<8x8xf32>
    %cst_87 = arith.constant 0.353553385 : f32
    %137 = vector.broadcast %cst_87 : f32 to vector<8x8xf32>
    %138 = arith.mulf %136, %137 : vector<8x8xf32>
    %c2_88 = arith.constant 2 : index
    %c0_89 = arith.constant 0 : index
    %c0_90 = arith.constant 0 : index
    %139 = vector.load %arg7[%c2_88, %c0_89, %c0_90] : memref<4x32x8xf32, #tpu.memory_space<vmem>>, vector<1x32x8xf32>
    %140 = vector.shape_cast %139 : vector<1x32x8xf32> to vector<32x8xf32>
    %cst_91 = arith.constant dense<0.000000e+00> : vector<24x8xf32>
    %141 = tpu.matmul %26, %140, %cst_91 {dimension_numbers = #tpu.dot_dimension_numbers<[1], [0], [0], [1], [0, 0, 1, 1], [], []>} : vector<24x32xf32>, vector<32x8xf32>, vector<24x8xf32> -> vector<24x8xf32>
    %c2_92 = arith.constant 2 : index
    %c0_93 = arith.constant 0 : index
    %c0_94 = arith.constant 0 : index
    %142 = vector.load %arg8[%c2_92, %c0_93, %c0_94] : memref<4x1x8xf32, #tpu.memory_space<vmem>>, vector<1x1x8xf32>
    %143 = vector.shape_cast %142 : vector<1x1x8xf32> to vector<1x8xf32>
    %144 = vector.broadcast %143 : vector<1x8xf32> to vector<24x8xf32>
    %145 = arith.addf %141, %144 : vector<24x8xf32>
    %c2_95 = arith.constant 2 : index
    %c0_96 = arith.constant 0 : index
    %c0_97 = arith.constant 0 : index
    %146 = vector.load %arg9[%c2_95, %c0_96, %c0_97] : memref<4x32x8xf32, #tpu.memory_space<vmem>>, vector<1x32x8xf32>
    %147 = vector.shape_cast %146 : vector<1x32x8xf32> to vector<32x8xf32>
    %cst_98 = arith.constant dense<0.000000e+00> : vector<24x8xf32>
    %148 = tpu.matmul %26, %147, %cst_98 {dimension_numbers = #tpu.dot_dimension_numbers<[1], [0], [0], [1], [0, 0, 1, 1], [], []>} : vector<24x32xf32>, vector<32x8xf32>, vector<24x8xf32> -> vector<24x8xf32>
    %c2_99 = arith.constant 2 : index
    %c0_100 = arith.constant 0 : index
    %c0_101 = arith.constant 0 : index
    %149 = vector.load %arg10[%c2_99, %c0_100, %c0_101] : memref<4x1x8xf32, #tpu.memory_space<vmem>>, vector<1x1x8xf32>
    %150 = vector.shape_cast %149 : vector<1x1x8xf32> to vector<1x8xf32>
    %151 = vector.broadcast %150 : vector<1x8xf32> to vector<24x8xf32>
    %152 = arith.addf %148, %151 : vector<24x8xf32>
    %153 = tpu.transpose %145, [1, 0] : vector<24x8xf32> -> vector<8x24xf32>
    %cst_102 = arith.constant dense<0.000000e+00> : vector<8x24xf32>
    %154 = tpu.matmul %138, %153, %cst_102 {dimension_numbers = #tpu.dot_dimension_numbers<[1], [0], [0], [1], [0, 0, 1, 1], [], []>} : vector<8x8xf32>, vector<8x24xf32>, vector<8x24xf32> -> vector<8x24xf32>
    %cst_103 = arith.constant dense<0xFF800000> : vector<8xf32>
    %155 = vector.multi_reduction <maximumf>, %154, %cst_103 [1] : vector<8x24xf32> to vector<8xf32>
    %156 = vector.shape_cast %155 : vector<8xf32> to vector<8x1xf32>
    %157 = vector.broadcast %156 : vector<8x1xf32> to vector<8x24xf32>
    %158 = arith.subf %154, %157 : vector<8x24xf32>
    %159 = math.exp %158 : vector<8x24xf32>
    %cst_104 = arith.constant dense<0.000000e+00> : vector<8xf32>
    %160 = vector.multi_reduction <add>, %159, %cst_104 [1] : vector<8x24xf32> to vector<8xf32>
    %161 = vector.shape_cast %160 : vector<8xf32> to vector<8x1xf32>
    %162 = vector.broadcast %161 : vector<8x1xf32> to vector<8x24xf32>
    %163 = arith.divf %159, %162 : vector<8x24xf32>
    %cst_105 = arith.constant dense<0.000000e+00> : vector<8x8xf32>
    %164 = tpu.matmul %163, %152, %cst_105 {dimension_numbers = #tpu.dot_dimension_numbers<[1], [0], [0], [1], [0, 0, 1, 1], [], []>} : vector<8x24xf32>, vector<24x8xf32>, vector<8x8xf32> -> vector<8x8xf32>
    %c2_106 = arith.constant 2 : index
    %c0_107 = arith.constant 0 : index
    %c0_108 = arith.constant 0 : index
    %165 = vector.load %arg11[%c2_106, %c0_107, %c0_108] : memref<4x8x32xf32, #tpu.memory_space<vmem>>, vector<1x8x32xf32>
    %166 = vector.shape_cast %165 : vector<1x8x32xf32> to vector<8x32xf32>
    %cst_109 = arith.constant dense<0.000000e+00> : vector<8x32xf32>
    %167 = tpu.matmul %164, %166, %cst_109 {dimension_numbers = #tpu.dot_dimension_numbers<[1], [0], [0], [1], [0, 0, 1, 1], [], []>} : vector<8x8xf32>, vector<8x32xf32>, vector<8x32xf32> -> vector<8x32xf32>
    %168 = arith.addf %129, %167 : vector<8x32xf32>
    %c3 = arith.constant 3 : index
    %c0_110 = arith.constant 0 : index
    %c0_111 = arith.constant 0 : index
    %169 = vector.load %arg5[%c3, %c0_110, %c0_111] : memref<4x32x8xf32, #tpu.memory_space<vmem>>, vector<1x32x8xf32>
    %170 = vector.shape_cast %169 : vector<1x32x8xf32> to vector<32x8xf32>
    %cst_112 = arith.constant dense<0.000000e+00> : vector<8x8xf32>
    %171 = tpu.matmul %50, %170, %cst_112 {dimension_numbers = #tpu.dot_dimension_numbers<[1], [0], [0], [1], [0, 0, 1, 1], [], []>} : vector<8x32xf32>, vector<32x8xf32>, vector<8x8xf32> -> vector<8x8xf32>
    %c3_113 = arith.constant 3 : index
    %c0_114 = arith.constant 0 : index
    %c0_115 = arith.constant 0 : index
    %172 = vector.load %arg6[%c3_113, %c0_114, %c0_115] : memref<4x1x8xf32, #tpu.memory_space<vmem>>, vector<1x1x8xf32>
    %173 = vector.shape_cast %172 : vector<1x1x8xf32> to vector<1x8xf32>
    %174 = vector.broadcast %173 : vector<1x8xf32> to vector<8x8xf32>
    %175 = arith.addf %171, %174 : vector<8x8xf32>
    %cst_116 = arith.constant 0.353553385 : f32
    %176 = vector.broadcast %cst_116 : f32 to vector<8x8xf32>
    %177 = arith.mulf %175, %176 : vector<8x8xf32>
    %c3_117 = arith.constant 3 : index
    %c0_118 = arith.constant 0 : index
    %c0_119 = arith.constant 0 : index
    %178 = vector.load %arg7[%c3_117, %c0_118, %c0_119] : memref<4x32x8xf32, #tpu.memory_space<vmem>>, vector<1x32x8xf32>
    %179 = vector.shape_cast %178 : vector<1x32x8xf32> to vector<32x8xf32>
    %cst_120 = arith.constant dense<0.000000e+00> : vector<24x8xf32>
    %180 = tpu.matmul %26, %179, %cst_120 {dimension_numbers = #tpu.dot_dimension_numbers<[1], [0], [0], [1], [0, 0, 1, 1], [], []>} : vector<24x32xf32>, vector<32x8xf32>, vector<24x8xf32> -> vector<24x8xf32>
    %c3_121 = arith.constant 3 : index
    %c0_122 = arith.constant 0 : index
    %c0_123 = arith.constant 0 : index
    %181 = vector.load %arg8[%c3_121, %c0_122, %c0_123] : memref<4x1x8xf32, #tpu.memory_space<vmem>>, vector<1x1x8xf32>
    %182 = vector.shape_cast %181 : vector<1x1x8xf32> to vector<1x8xf32>
    %183 = vector.broadcast %182 : vector<1x8xf32> to vector<24x8xf32>
    %184 = arith.addf %180, %183 : vector<24x8xf32>
    %c3_124 = arith.constant 3 : index
    %c0_125 = arith.constant 0 : index
    %c0_126 = arith.constant 0 : index
    %185 = vector.load %arg9[%c3_124, %c0_125, %c0_126] : memref<4x32x8xf32, #tpu.memory_space<vmem>>, vector<1x32x8xf32>
    %186 = vector.shape_cast %185 : vector<1x32x8xf32> to vector<32x8xf32>
    %cst_127 = arith.constant dense<0.000000e+00> : vector<24x8xf32>
    %187 = tpu.matmul %26, %186, %cst_127 {dimension_numbers = #tpu.dot_dimension_numbers<[1], [0], [0], [1], [0, 0, 1, 1], [], []>} : vector<24x32xf32>, vector<32x8xf32>, vector<24x8xf32> -> vector<24x8xf32>
    %c3_128 = arith.constant 3 : index
    %c0_129 = arith.constant 0 : index
    %c0_130 = arith.constant 0 : index
    %188 = vector.load %arg10[%c3_128, %c0_129, %c0_130] : memref<4x1x8xf32, #tpu.memory_space<vmem>>, vector<1x1x8xf32>
    %189 = vector.shape_cast %188 : vector<1x1x8xf32> to vector<1x8xf32>
    %190 = vector.broadcast %189 : vector<1x8xf32> to vector<24x8xf32>
    %191 = arith.addf %187, %190 : vector<24x8xf32>
    %192 = tpu.transpose %184, [1, 0] : vector<24x8xf32> -> vector<8x24xf32>
    %cst_131 = arith.constant dense<0.000000e+00> : vector<8x24xf32>
    %193 = tpu.matmul %177, %192, %cst_131 {dimension_numbers = #tpu.dot_dimension_numbers<[1], [0], [0], [1], [0, 0, 1, 1], [], []>} : vector<8x8xf32>, vector<8x24xf32>, vector<8x24xf32> -> vector<8x24xf32>
    %cst_132 = arith.constant dense<0xFF800000> : vector<8xf32>
    %194 = vector.multi_reduction <maximumf>, %193, %cst_132 [1] : vector<8x24xf32> to vector<8xf32>
    %195 = vector.shape_cast %194 : vector<8xf32> to vector<8x1xf32>
    %196 = vector.broadcast %195 : vector<8x1xf32> to vector<8x24xf32>
    %197 = arith.subf %193, %196 : vector<8x24xf32>
    %198 = math.exp %197 : vector<8x24xf32>
    %cst_133 = arith.constant dense<0.000000e+00> : vector<8xf32>
    %199 = vector.multi_reduction <add>, %198, %cst_133 [1] : vector<8x24xf32> to vector<8xf32>
    %200 = vector.shape_cast %199 : vector<8xf32> to vector<8x1xf32>
    %201 = vector.broadcast %200 : vector<8x1xf32> to vector<8x24xf32>
    %202 = arith.divf %198, %201 : vector<8x24xf32>
    %cst_134 = arith.constant dense<0.000000e+00> : vector<8x8xf32>
    %203 = tpu.matmul %202, %191, %cst_134 {dimension_numbers = #tpu.dot_dimension_numbers<[1], [0], [0], [1], [0, 0, 1, 1], [], []>} : vector<8x24xf32>, vector<24x8xf32>, vector<8x8xf32> -> vector<8x8xf32>
    %c3_135 = arith.constant 3 : index
    %c0_136 = arith.constant 0 : index
    %c0_137 = arith.constant 0 : index
    %204 = vector.load %arg11[%c3_135, %c0_136, %c0_137] : memref<4x8x32xf32, #tpu.memory_space<vmem>>, vector<1x8x32xf32>
    %205 = vector.shape_cast %204 : vector<1x8x32xf32> to vector<8x32xf32>
    %cst_138 = arith.constant dense<0.000000e+00> : vector<8x32xf32>
    %206 = tpu.matmul %203, %205, %cst_138 {dimension_numbers = #tpu.dot_dimension_numbers<[1], [0], [0], [1], [0, 0, 1, 1], [], []>} : vector<8x8xf32>, vector<8x32xf32>, vector<8x32xf32> -> vector<8x32xf32>
    %207 = arith.addf %168, %206 : vector<8x32xf32>
    %c0_139 = arith.constant 0 : index
    %c0_140 = arith.constant 0 : index
    %208 = vector.load %arg12[%c0_139, %c0_140] : memref<1x32xf32, #tpu.memory_space<vmem>>, vector<1x32xf32>
    %209 = vector.broadcast %208 : vector<1x32xf32> to vector<8x32xf32>
    %210 = arith.addf %207, %209 : vector<8x32xf32>
    %211 = arith.addf %210, %2 : vector<8x32xf32>
    %c0_141 = arith.constant 0 : index
    %c0_142 = arith.constant 0 : index
    %212 = vector.load %arg13[%c0_141, %c0_142] : memref<2x32xf32, #tpu.memory_space<vmem>>, vector<1x32xf32>
    %c1_143 = arith.constant 1 : index
    %c0_144 = arith.constant 0 : index
    %213 = vector.load %arg13[%c1_143, %c0_144] : memref<2x32xf32, #tpu.memory_space<vmem>>, vector<1x32xf32>
    %cst_145 = arith.constant dense<0.000000e+00> : vector<8xf32>
    %214 = vector.multi_reduction <add>, %211, %cst_145 [1] : vector<8x32xf32> to vector<8xf32>
    %215 = vector.shape_cast %214 : vector<8xf32> to vector<8x1xf32>
    %cst_146 = arith.constant 3.200000e+01 : f32
    %216 = vector.broadcast %cst_146 : f32 to vector<8x1xf32>
    %217 = arith.divf %215, %216 : vector<8x1xf32>
    %218 = vector.broadcast %217 : vector<8x1xf32> to vector<8x32xf32>
    %219 = arith.subf %211, %218 : vector<8x32xf32>
    %220 = arith.mulf %219, %219 : vector<8x32xf32>
    %cst_147 = arith.constant dense<0.000000e+00> : vector<8xf32>
    %221 = vector.multi_reduction <add>, %220, %cst_147 [1] : vector<8x32xf32> to vector<8xf32>
    %222 = vector.shape_cast %221 : vector<8xf32> to vector<8x1xf32>
    %cst_148 = arith.constant 3.200000e+01 : f32
    %223 = vector.broadcast %cst_148 : f32 to vector<8x1xf32>
    %224 = arith.divf %222, %223 : vector<8x1xf32>
    %225 = vector.broadcast %217 : vector<8x1xf32> to vector<8x32xf32>
    %226 = arith.subf %211, %225 : vector<8x32xf32>
    %cst_149 = arith.constant 9.99999974E-6 : f32
    %227 = vector.broadcast %cst_149 : f32 to vector<8x1xf32>
    %228 = arith.addf %224, %227 : vector<8x1xf32>
    %229 = math.rsqrt %228 : vector<8x1xf32>
    %230 = vector.broadcast %229 : vector<8x1xf32> to vector<8x32xf32>
    %231 = arith.mulf %226, %230 : vector<8x32xf32>
    %232 = vector.broadcast %212 : vector<1x32xf32> to vector<8x32xf32>
    %233 = arith.mulf %231, %232 : vector<8x32xf32>
    %234 = vector.broadcast %213 : vector<1x32xf32> to vector<8x32xf32>
    %235 = arith.addf %233, %234 : vector<8x32xf32>
    %c0_150 = arith.constant 0 : index
    %c0_151 = arith.constant 0 : index
    %236 = vector.load %arg14[%c0_150, %c0_151] : memref<32x32xf32, #tpu.memory_space<vmem>>, vector<32x32xf32>
    %cst_152 = arith.constant dense<0.000000e+00> : vector<8x32xf32>
    %237 = tpu.matmul %235, %236, %cst_152 {dimension_numbers = #tpu.dot_dimension_numbers<[1], [0], [0], [1], [0, 0, 1, 1], [], []>} : vector<8x32xf32>, vector<32x32xf32>, vector<8x32xf32> -> vector<8x32xf32>
    %c0_153 = arith.constant 0 : index
    %c0_154 = arith.constant 0 : index
    %238 = vector.load %arg15[%c0_153, %c0_154] : memref<1x32xf32, #tpu.memory_space<vmem>>, vector<1x32xf32>
    %239 = vector.broadcast %238 : vector<1x32xf32> to vector<8x32xf32>
    %240 = arith.addf %237, %239 : vector<8x32xf32>
    %cst_155 = arith.constant 5.000000e-01 : f32
    %241 = vector.broadcast %cst_155 : f32 to vector<8x32xf32>
    %242 = arith.mulf %241, %240 : vector<8x32xf32>
    %cst_156 = arith.constant 4.471500e-02 : f32
    %243 = vector.broadcast %cst_156 : f32 to vector<8x32xf32>
    %244 = arith.mulf %243, %240 : vector<8x32xf32>
    %245 = arith.mulf %244, %240 : vector<8x32xf32>
    %246 = arith.mulf %245, %240 : vector<8x32xf32>
    %247 = arith.addf %240, %246 : vector<8x32xf32>
    %cst_157 = arith.constant 0.797884583 : f32
    %248 = vector.broadcast %cst_157 : f32 to vector<8x32xf32>
    %249 = arith.mulf %248, %247 : vector<8x32xf32>
    %250 = math.tanh %249 : vector<8x32xf32>
    %cst_158 = arith.constant 1.000000e+00 : f32
    %251 = vector.broadcast %cst_158 : f32 to vector<8x32xf32>
    %252 = arith.addf %251, %250 : vector<8x32xf32>
    %253 = arith.mulf %242, %252 : vector<8x32xf32>
    %c0_159 = arith.constant 0 : index
    %c0_160 = arith.constant 0 : index
    %254 = vector.load %arg16[%c0_159, %c0_160] : memref<32x32xf32, #tpu.memory_space<vmem>>, vector<32x32xf32>
    %cst_161 = arith.constant dense<0.000000e+00> : vector<8x32xf32>
    %255 = tpu.matmul %253, %254, %cst_161 {dimension_numbers = #tpu.dot_dimension_numbers<[1], [0], [0], [1], [0, 0, 1, 1], [], []>} : vector<8x32xf32>, vector<32x32xf32>, vector<8x32xf32> -> vector<8x32xf32>
    %c0_162 = arith.constant 0 : index
    %c0_163 = arith.constant 0 : index
    %256 = vector.load %arg17[%c0_162, %c0_163] : memref<1x32xf32, #tpu.memory_space<vmem>>, vector<1x32xf32>
    %257 = vector.broadcast %256 : vector<1x32xf32> to vector<8x32xf32>
    %258 = arith.addf %255, %257 : vector<8x32xf32>
    %259 = arith.addf %258, %211 : vector<8x32xf32>
    %c0_164 = arith.constant 0 : index
    %c0_165 = arith.constant 0 : index
    %c0_166 = arith.constant 0 : index
    %260 = vector.load %arg18[%c0_164, %c0_165, %c0_166] : memref<1x8x32xf32, #tpu.memory_space<vmem>>, vector<1x8x32xf32>
    %261 = vector.shape_cast %260 : vector<1x8x32xf32> to vector<8x32xf32>
    %262 = vector.shape_cast %259 : vector<8x32xf32> to vector<1x8x32xf32>
    tpu.vector_store %arg18[%c0_164, %c0_165, %c0_166], %262 {strides = array<i32>} : memref<1x8x32xf32, #tpu.memory_space<vmem>>, vector<1x8x32xf32>,
    return
  }
  func.func @transform_0(%arg0: i32) -> (i32, i32, i32) {
    %c0_i32 = arith.constant 0 : i32
    %c0_i32_0 = arith.constant 0 : i32
    %c0_i32_1 = arith.constant 0 : i32
    return %arg0, %c0_i32, %c0_i32_0 : i32, i32, i32
  }
  func.func @transform_1(%arg0: i32) -> (i32, i32) {
    %c0_i32 = arith.constant 0 : i32
    %c0_i32_0 = arith.constant 0 : i32
    %c0_i32_1 = arith.constant 0 : i32
    return %c0_i32, %c0_i32_0 : i32, i32
  }
  func.func @transform_2(%arg0: i32) -> (i32, i32) {
    %c0_i32 = arith.constant 0 : i32
    %c0_i32_0 = arith.constant 0 : i32
    %c0_i32_1 = arith.constant 0 : i32
    return %c0_i32, %c0_i32_0 : i32, i32
  }
  func.func @transform_3(%arg0: i32) -> (i32, i32) {
    %c0_i32 = arith.constant 0 : i32
    %c0_i32_0 = arith.constant 0 : i32
    %c0_i32_1 = arith.constant 0 : i32
    return %c0_i32, %c0_i32_0 : i32, i32
  }
  func.func @transform_4(%arg0: i32) -> (i32, i32, i32) {
    %c0_i32 = arith.constant 0 : i32
    %c0_i32_0 = arith.constant 0 : i32
    %c0_i32_1 = arith.constant 0 : i32
    %c0_i32_2 = arith.constant 0 : i32
    return %c0_i32, %c0_i32_0, %c0_i32_1 : i32, i32, i32
  }
  func.func @transform_5(%arg0: i32) -> (i32, i32, i32) {
    %c0_i32 = arith.constant 0 : i32
    %c0_i32_0 = arith.constant 0 : i32
    %c0_i32_1 = arith.constant 0 : i32
    %c0_i32_2 = arith.constant 0 : i32
    return %c0_i32, %c0_i32_0, %c0_i32_1 : i32, i32, i32
  }
  func.func @transform_6(%arg0: i32) -> (i32, i32, i32) {
    %c0_i32 = arith.constant 0 : i32
    %c0_i32_0 = arith.constant 0 : i32
    %c0_i32_1 = arith.constant 0 : i32
    %c0_i32_2 = arith.constant 0 : i32
    return %c0_i32, %c0_i32_0, %c0_i32_1 : i32, i32, i32
  }
  func.func @transform_7(%arg0: i32) -> (i32, i32, i32) {
    %c0_i32 = arith.constant 0 : i32
    %c0_i32_0 = arith.constant 0 : i32
    %c0_i32_1 = arith.constant 0 : i32
    %c0_i32_2 = arith.constant 0 : i32
    return %c0_i32, %c0_i32_0, %c0_i32_1 : i32, i32, i32
  }
  func.func @transform_8(%arg0: i32) -> (i32, i32, i32) {
    %c0_i32 = arith.constant 0 : i32
    %c0_i32_0 = arith.constant 0 : i32
    %c0_i32_1 = arith.constant 0 : i32
    %c0_i32_2 = arith.constant 0 : i32
    return %c0_i32, %c0_i32_0, %c0_i32_1 : i32, i32, i32
  }
  func.func @transform_9(%arg0: i32) -> (i32, i32, i32) {
    %c0_i32 = arith.constant 0 : i32
    %c0_i32_0 = arith.constant 0 : i32
    %c0_i32_1 = arith.constant 0 : i32
    %c0_i32_2 = arith.constant 0 : i32
    return %c0_i32, %c0_i32_0, %c0_i32_1 : i32, i32, i32
  }
  func.func @transform_10(%arg0: i32) -> (i32, i32, i32) {
    %c0_i32 = arith.constant 0 : i32
    %c0_i32_0 = arith.constant 0 : i32
    %c0_i32_1 = arith.constant 0 : i32
    %c0_i32_2 = arith.constant 0 : i32
    return %c0_i32, %c0_i32_0, %c0_i32_1 : i32, i32, i32
  }
  func.func @transform_11(%arg0: i32) -> (i32, i32) {
    %c0_i32 = arith.constant 0 : i32
    %c0_i32_0 = arith.constant 0 : i32
    %c0_i32_1 = arith.constant 0 : i32
    return %c0_i32, %c0_i32_0 : i32, i32
  }
  func.func @transform_12(%arg0: i32) -> (i32, i32) {
    %c0_i32 = arith.constant 0 : i32
    %c0_i32_0 = arith.constant 0 : i32
    %c0_i32_1 = arith.constant 0 : i32
    return %c0_i32, %c0_i32_0 : i32, i32
  }
  func.func @transform_13(%arg0: i32) -> (i32, i32) {
    %c0_i32 = arith.constant 0 : i32
    %c0_i32_0 = arith.constant 0 : i32
    %c0_i32_1 = arith.constant 0 : i32
    return %c0_i32, %c0_i32_0 : i32, i32
  }
  func.func @transform_14(%arg0: i32) -> (i32, i32) {
    %c0_i32 = arith.constant 0 : i32
    %c0_i32_0 = arith.constant 0 : i32
    %c0_i32_1 = arith.constant 0 : i32
    return %c0_i32, %c0_i32_0 : i32, i32
  }
  func.func @transform_15(%arg0: i32) -> (i32, i32) {
    %c0_i32 = arith.constant 0 : i32
    %c0_i32_0 = arith.constant 0 : i32
    %c0_i32_1 = arith.constant 0 : i32
    return %c0_i32, %c0_i32_0 : i32, i32
  }
  func.func @transform_16(%arg0: i32) -> (i32, i32) {
    %c0_i32 = arith.constant 0 : i32
    %c0_i32_0 = arith.constant 0 : i32
    %c0_i32_1 = arith.constant 0 : i32
    return %c0_i32, %c0_i32_0 : i32, i32
  }
  func.func @transform_17(%arg0: i32) -> (i32, i32, i32) {
    %c0_i32 = arith.constant 0 : i32
    %c0_i32_0 = arith.constant 0 : i32
    %c0_i32_1 = arith.constant 0 : i32
    return %arg0, %c0_i32, %c0_i32_0 : i32, i32, i32
  }
}

</mosaic_0001>

<llo_original>
// kernel: tpu_custom_call.1
$region0: #{tpu_custom_call.1}
  #allocation0 [shape = 'u32[]', space=smem, size = 0x4, offset = 0x4, fixed_abs, tag = 'smem constant byte address 0x4 - core index']
  #allocation1 [shape = 'u32[72,128]{1,0:T(1,128)}', space=vmem, size = 0x9000, scoped, tag = 'internal scratch']
  %s0 = inlined_call_operand.hbm [shape: f32[16,24,32], index: 0, kind: input, shape index: {}]
  %s1 = inlined_call_operand.vmem [shape: f32[8,32], index: 1, kind: input, shape index: {}]
  %s2 = inlined_call_operand.vmem [shape: f32[2,32], index: 2, kind: input, shape index: {}]
  %s3 = inlined_call_operand.vmem [shape: f32[2,32], index: 3, kind: input, shape index: {}]
  %s4 = inlined_call_operand.vmem [shape: f32[4,32,8], index: 4, kind: input, shape index: {}]
  %s5 = inlined_call_operand.vmem [shape: f32[4,1,8], index: 5, kind: input, shape index: {}]
  %s6 = inlined_call_operand.vmem [shape: f32[4,32,8], index: 6, kind: input, shape index: {}]
  %s7 = inlined_call_operand.vmem [shape: f32[4,1,8], index: 7, kind: input, shape index: {}]
  %s8 = inlined_call_operand.vmem [shape: f32[4,32,8], index: 8, kind: input, shape index: {}]
  %s9 = inlined_call_operand.vmem [shape: f32[4,1,8], index: 9, kind: input, shape index: {}]
  %s10 = inlined_call_operand.vmem [shape: f32[4,8,32], index: 10, kind: input, shape index: {}]
  %s11 = inlined_call_operand.vmem [shape: f32[1,32], index: 11, kind: input, shape index: {}]
  %s12 = inlined_call_operand.vmem [shape: f32[2,32], index: 12, kind: input, shape index: {}]
  %s13 = inlined_call_operand.vmem [shape: f32[32,32], index: 13, kind: input, shape index: {}]
  %s14 = inlined_call_operand.vmem [shape: f32[1,32], index: 14, kind: input, shape index: {}]
  %s15 = inlined_call_operand.vmem [shape: f32[32,32], index: 15, kind: input, shape index: {}]
  %s16 = inlined_call_operand.vmem [shape: f32[1,32], index: 16, kind: input, shape index: {}]
  %s17 = inlined_call_operand.hbm [shape: f32[16,8,32], index: 17, kind: output, shape index: {}]
  %s18 = sld [smem:[#allocation0]]
  $region105: #{tpu_custom_call.1} parent=0
    _
  %s20 = ssub.s32 1, %s18
  %s21 = scalar_select 0, %s20, %s18
  $region1: #{tpu_custom_call.1} parent=0
    #allocation2 [shape = 'u8[24576]{0}', space=vmem, size = 0x6000, scoped, tag = 'input window, operand 0']
    #allocation3 [shape = 's32[2]{0}', space=sflag, size = 0x8, scoped, tag = 'scoped memory for tpu_custom_call.1']
    #allocation4 [shape = 's32[2]{0}', space=sflag, size = 0x8, scoped, tag = 'scoped memory for tpu_custom_call.1']
    #allocation5 [shape = 'u8[8192]{0}', space=vmem, size = 0x2000, scoped, tag = 'output window, operand 0']
    %22 = vsyncpa [#allocation3], 0
    %s23 = scalar_lea.sflag [#allocation3], 1
    %24 = vsyncpa %s23, 0
    %25 = vsyncpa [#allocation4], 0
    %s26 = scalar_lea.sflag [#allocation4], 1
    %27 = vsyncpa %s26, 0
    loop: start=0, step=1, limit=18
    $region2: #{tpu_custom_call.1} parent=1 // loop_pre_header
      _
    $region3: #{tpu_custom_call.1} parent=1 // loop_header
      %s29 = sphi 0, %s33
      %p30 = scmp.ge.s32.totalorder %s29, 18
      %s39 = sphi 0, %s41
      %s42 = sphi 0, %s39
      %s43 = sphi 0, %s42
      %s59 = sphi 0, %s43
      %s63 = sphi 0, %s63
      %s65 = sphi 0, %s63
      %s66 = sphi 0, %s65
      %s80 = sphi 0, %s66
      %s84 = sphi 0, %s84
      %s86 = sphi 0, %s84
      %s87 = sphi 0, %s86
      %s101 = sphi 0, %s87
      %s105 = sphi 0, %s105
      %s107 = sphi 0, %s105
      %s108 = sphi 0, %s107
      %s122 = sphi 0, %s108
      %s126 = sphi 0, %s126
      %s128 = sphi 0, %s126
      %s129 = sphi 0, %s128
      %s143 = sphi 0, %s129
      %s147 = sphi 0, %s147
      %s149 = sphi 0, %s147
      %s150 = sphi 0, %s149
      %s164 = sphi 0, %s150
      %s168 = sphi 0, %s168
      %s170 = sphi 0, %s168
      %s171 = sphi 0, %s170
      %s185 = sphi 0, %s171
      %s189 = sphi 0, %s189
      %s191 = sphi 0, %s189
      %s192 = sphi 0, %s191
      %s206 = sphi 0, %s192
      %s210 = sphi 0, %s210
      %s212 = sphi 0, %s210
      %s213 = sphi 0, %s212
      %s227 = sphi 0, %s213
      %s231 = sphi 0, %s231
      %s233 = sphi 0, %s231
      %s234 = sphi 0, %s233
      %s248 = sphi 0, %s234
      %s252 = sphi 0, %s252
      %s254 = sphi 0, %s252
      %s255 = sphi 0, %s254
      %s269 = sphi 0, %s255
      %s273 = sphi 0, %s273
      %s275 = sphi 0, %s273
      %s276 = sphi 0, %s275
      %s290 = sphi 0, %s276
      %s294 = sphi 0, %s294
      %s296 = sphi 0, %s294
      %s297 = sphi 0, %s296
      %s311 = sphi 0, %s297
      %s315 = sphi 0, %s315
      %s317 = sphi 0, %s315
      %s318 = sphi 0, %s317
      %s332 = sphi 0, %s318
      %s336 = sphi 0, %s336
      %s338 = sphi 0, %s336
      %s339 = sphi 0, %s338
      %s353 = sphi 0, %s339
      %s357 = sphi 0, %s357
      %s359 = sphi 0, %s357
      %s360 = sphi 0, %s359
      %s374 = sphi 0, %s360
      %s378 = sphi 0, %s378
      %s380 = sphi 0, %s378
      %s381 = sphi 0, %s380
      %s395 = sphi 0, %s381
      %s401 = sphi 0, %s403
      %s404 = sphi 0, %s401
      %s405 = sphi 0, %s404
      %s421 = sphi 0, %s405
    $region4: #{tpu_custom_call.1} parent=1 // loop_header_branch
      %32 = sbr.rel (%p30) target = $region8
    $region5: #{tpu_custom_call.1} parent=1 // loop_body
      %s34 = ssub.s32 %s29, 1
      %s35 = ssub.s32 %s29, 2
      %s36 = sadd.s32 %s29, 1
      %s37 = ssub.s32 %s29, %s36
      %p38 = scmp.eq.s32.totalorder %s37, 0
      %s40 = sadd.s32 %s39, 1
      %s41 = scalar_select %p38, %s39, %s40
      %p44 = pneg %p38
      %p45 = scmp.eq.s32.totalorder %s29, 15
      %p46 = por %p44, %p45
      %p47 = scmp.ne.s32.totalorder %s39, %s42
      %p48 = scmp.eq.s32.totalorder %s29, 0
      %p49 = por %p47, %p48
      %p50 = scmp.ne.s32.totalorder %s39, %s42
      %p51 = scmp.eq.s32.totalorder %s34, 15
      %p52 = por %p50, %p51
      %p53 = scmp.ne.s32.totalorder %s42, %s43
      %p54 = scmp.eq.s32.totalorder %s34, 0
      %p55 = por %p53, %p54
      %p56 = scmp.ne.s32.totalorder %s42, %s43
      %p57 = scmp.eq.s32.totalorder %s35, 15
      %p58 = por %p56, %p57
      %p60 = scmp.ne.s32.totalorder %s43, %s59
      %p61 = scmp.eq.s32.totalorder %s35, 0
      %p62 = por %p60, %p61
      %s64 = sadd.s32 %s63, 1
      %p67 = scmp.eq.s32.totalorder %s29, 15
      %p68 = scmp.ne.s32.totalorder %s63, %s65
      %p69 = scmp.eq.s32.totalorder %s29, 0
      %p70 = por %p68, %p69
      %p71 = scmp.ne.s32.totalorder %s63, %s65
      %p72 = scmp.eq.s32.totalorder %s34, 15
      %p73 = por %p71, %p72
      %p74 = scmp.ne.s32.totalorder %s65, %s66
      %p75 = scmp.eq.s32.totalorder %s34, 0
      %p76 = por %p74, %p75
      %p77 = scmp.ne.s32.totalorder %s65, %s66
      %p78 = scmp.eq.s32.totalorder %s35, 15
      %p79 = por %p77, %p78
      %p81 = scmp.ne.s32.totalorder %s66, %s80
      %p82 = scmp.eq.s32.totalorder %s35, 0
      %p83 = por %p81, %p82
      %s85 = sadd.s32 %s84, 1
      %p88 = scmp.eq.s32.totalorder %s29, 15
      %p89 = scmp.ne.s32.totalorder %s84, %s86
      %p90 = scmp.eq.s32.totalorder %s29, 0
      %p91 = por %p89, %p90
      %p92 = scmp.ne.s32.totalorder %s84, %s86
      %p93 = scmp.eq.s32.totalorder %s34, 15
      %p94 = por %p92, %p93
      %p95 = scmp.ne.s32.totalorder %s86, %s87
      %p96 = scmp.eq.s32.totalorder %s34, 0
      %p97 = por %p95, %p96
      %p98 = scmp.ne.s32.totalorder %s86, %s87
      %p99 = scmp.eq.s32.totalorder %s35, 15
      %p100 = por %p98, %p99
      %p102 = scmp.ne.s32.totalorder %s87, %s101
      %p103 = scmp.eq.s32.totalorder %s35, 0
      %p104 = por %p102, %p103
      %s106 = sadd.s32 %s105, 1
      %p109 = scmp.eq.s32.totalorder %s29, 15
      %p110 = scmp.ne.s32.totalorder %s105, %s107
      %p111 = scmp.eq.s32.totalorder %s29, 0
      %p112 = por %p110, %p111
      %p113 = scmp.ne.s32.totalorder %s105, %s107
      %p114 = scmp.eq.s32.totalorder %s34, 15
      %p115 = por %p113, %p114
      %p116 = scmp.ne.s32.totalorder %s107, %s108
      %p117 = scmp.eq.s32.totalorder %s34, 0
      %p118 = por %p116, %p117
      %p119 = scmp.ne.s32.totalorder %s107, %s108
      %p120 = scmp.eq.s32.totalorder %s35, 15
      %p121 = por %p119, %p120
      %p123 = scmp.ne.s32.totalorder %s108, %s122
      %p124 = scmp.eq.s32.totalorder %s35, 0
      %p125 = por %p123, %p124
      %s127 = sadd.s32 %s126, 1
      %p130 = scmp.eq.s32.totalorder %s29, 15
      %p131 = scmp.ne.s32.totalorder %s126, %s128
      %p132 = scmp.eq.s32.totalorder %s29, 0
      %p133 = por %p131, %p132
      %p134 = scmp.ne.s32.totalorder %s126, %s128
      %p135 = scmp.eq.s32.totalorder %s34, 15
      %p136 = por %p134, %p135
      %p137 = scmp.ne.s32.totalorder %s128, %s129
      %p138 = scmp.eq.s32.totalorder %s34, 0
      %p139 = por %p137, %p138
      %p140 = scmp.ne.s32.totalorder %s128, %s129
      %p141 = scmp.eq.s32.totalorder %s35, 15
      %p142 = por %p140, %p141
      %p144 = scmp.ne.s32.totalorder %s129, %s143
      %p145 = scmp.eq.s32.totalorder %s35, 0
      %p146 = por %p144, %p145
      %s148 = sadd.s32 %s147, 1
      %p151 = scmp.eq.s32.totalorder %s29, 15
      %p152 = scmp.ne.s32.totalorder %s147, %s149
      %p153 = scmp.eq.s32.totalorder %s29, 0
      %p154 = por %p152, %p153
      %p155 = scmp.ne.s32.totalorder %s147, %s149
      %p156 = scmp.eq.s32.totalorder %s34, 15
      %p157 = por %p155, %p156
      %p158 = scmp.ne.s32.totalorder %s149, %s150
      %p159 = scmp.eq.s32.totalorder %s34, 0
      %p160 = por %p158, %p159
      %p161 = scmp.ne.s32.totalorder %s149, %s150
      %p162 = scmp.eq.s32.totalorder %s35, 15
      %p163 = por %p161, %p162
      %p165 = scmp.ne.s32.totalorder %s150, %s164
      %p166 = scmp.eq.s32.totalorder %s35, 0
      %p167 = por %p165, %p166
      %s169 = sadd.s32 %s168, 1
      %p172 = scmp.eq.s32.totalorder %s29, 15
      %p173 = scmp.ne.s32.totalorder %s168, %s170
      %p174 = scmp.eq.s32.totalorder %s29, 0
      %p175 = por %p173, %p174
      %p176 = scmp.ne.s32.totalorder %s168, %s170
      %p177 = scmp.eq.s32.totalorder %s34, 15
      %p178 = por %p176, %p177
      %p179 = scmp.ne.s32.totalorder %s170, %s171
      %p180 = scmp.eq.s32.totalorder %s34, 0
      %p181 = por %p179, %p180
      %p182 = scmp.ne.s32.totalorder %s170, %s171
      %p183 = scmp.eq.s32.totalorder %s35, 15
      %p184 = por %p182, %p183
      %p186 = scmp.ne.s32.totalorder %s171, %s185
      %p187 = scmp.eq.s32.totalorder %s35, 0
      %p188 = por %p186, %p187
      %s190 = sadd.s32 %s189, 1
      %p193 = scmp.eq.s32.totalorder %s29, 15
      %p194 = scmp.ne.s32.totalorder %s189, %s191
      %p195 = scmp.eq.s32.totalorder %s29, 0
      %p196 = por %p194, %p195
      %p197 = scmp.ne.s32.totalorder %s189, %s191
      %p198 = scmp.eq.s32.totalorder %s34, 15
      %p199 = por %p197, %p198
      %p200 = scmp.ne.s32.totalorder %s191, %s192
      %p201 = scmp.eq.s32.totalorder %s34, 0
      %p202 = por %p200, %p201
      %p203 = scmp.ne.s32.totalorder %s191, %s192
      %p204 = scmp.eq.s32.totalorder %s35, 15
      %p205 = por %p203, %p204
      %p207 = scmp.ne.s32.totalorder %s192, %s206
      %p208 = scmp.eq.s32.totalorder %s35, 0
      %p209 = por %p207, %p208
      %s211 = sadd.s32 %s210, 1
      %p214 = scmp.eq.s32.totalorder %s29, 15
      %p215 = scmp.ne.s32.totalorder %s210, %s212
      %p216 = scmp.eq.s32.totalorder %s29, 0
      %p217 = por %p215, %p216
      %p218 = scmp.ne.s32.totalorder %s210, %s212
      %p219 = scmp.eq.s32.totalorder %s34, 15
      %p220 = por %p218, %p219
      %p221 = scmp.ne.s32.totalorder %s212, %s213
      %p222 = scmp.eq.s32.totalorder %s34, 0
      %p223 = por %p221, %p222
      %p224 = scmp.ne.s32.totalorder %s212, %s213
      %p225 = scmp.eq.s32.totalorder %s35, 15
      %p226 = por %p224, %p225
      %p228 = scmp.ne.s32.totalorder %s213, %s227
      %p229 = scmp.eq.s32.totalorder %s35, 0
      %p230 = por %p228, %p229
      %s232 = sadd.s32 %s231, 1
      %p235 = scmp.eq.s32.totalorder %s29, 15
      %p236 = scmp.ne.s32.totalorder %s231, %s233
      %p237 = scmp.eq.s32.totalorder %s29, 0
      %p238 = por %p236, %p237
      %p239 = scmp.ne.s32.totalorder %s231, %s233
      %p240 = scmp.eq.s32.totalorder %s34, 15
      %p241 = por %p239, %p240
      %p242 = scmp.ne.s32.totalorder %s233, %s234
      %p243 = scmp.eq.s32.totalorder %s34, 0
      %p244 = por %p242, %p243
      %p245 = scmp.ne.s32.totalorder %s233, %s234
      %p246 = scmp.eq.s32.totalorder %s35, 15
      %p247 = por %p245, %p246
      %p249 = scmp.ne.s32.totalorder %s234, %s248
      %p250 = scmp.eq.s32.totalorder %s35, 0
      %p251 = por %p249, %p250
      %s253 = sadd.s32 %s252, 1
      %p256 = scmp.eq.s32.totalorder %s29, 15
      %p257 = scmp.ne.s32.totalorder %s252, %s254
      %p258 = scmp.eq.s32.totalorder %s29, 0
      %p259 = por %p257, %p258
      %p260 = scmp.ne.s32.totalorder %s252, %s254
      %p261 = scmp.eq.s32.totalorder %s34, 15
      %p262 = por %p260, %p261
      %p263 = scmp.ne.s32.totalorder %s254, %s255
      %p264 = scmp.eq.s32.totalorder %s34, 0
      %p265 = por %p263, %p264
      %p266 = scmp.ne.s32.totalorder %s254, %s255
      %p267 = scmp.eq.s32.totalorder %s35, 15
      %p268 = por %p266, %p267
      %p270 = scmp.ne.s32.totalorder %s255, %s269
      %p271 = scmp.eq.s32.totalorder %s35, 0
      %p272 = por %p270, %p271
      %s274 = sadd.s32 %s273, 1
      %p277 = scmp.eq.s32.totalorder %s29, 15
      %p278 = scmp.ne.s32.totalorder %s273, %s275
      %p279 = scmp.eq.s32.totalorder %s29, 0
      %p280 = por %p278, %p279
      %p281 = scmp.ne.s32.totalorder %s273, %s275
      %p282 = scmp.eq.s32.totalorder %s34, 15
      %p283 = por %p281, %p282
      %p284 = scmp.ne.s32.totalorder %s275, %s276
      %p285 = scmp.eq.s32.totalorder %s34, 0
      %p286 = por %p284, %p285
      %p287 = scmp.ne.s32.totalorder %s275, %s276
      %p288 = scmp.eq.s32.totalorder %s35, 15
      %p289 = por %p287, %p288
      %p291 = scmp.ne.s32.totalorder %s276, %s290
      %p292 = scmp.eq.s32.totalorder %s35, 0
      %p293 = por %p291, %p292
      %s295 = sadd.s32 %s294, 1
      %p298 = scmp.eq.s32.totalorder %s29, 15
      %p299 = scmp.ne.s32.totalorder %s294, %s296
      %p300 = scmp.eq.s32.totalorder %s29, 0
      %p301 = por %p299, %p300
      %p302 = scmp.ne.s32.totalorder %s294, %s296
      %p303 = scmp.eq.s32.totalorder %s34, 15
      %p304 = por %p302, %p303
      %p305 = scmp.ne.s32.totalorder %s296, %s297
      %p306 = scmp.eq.s32.totalorder %s34, 0
      %p307 = por %p305, %p306
      %p308 = scmp.ne.s32.totalorder %s296, %s297
      %p309 = scmp.eq.s32.totalorder %s35, 15
      %p310 = por %p308, %p309
      %p312 = scmp.ne.s32.totalorder %s297, %s311
      %p313 = scmp.eq.s32.totalorder %s35, 0
      %p314 = por %p312, %p313
      %s316 = sadd.s32 %s315, 1
      %p319 = scmp.eq.s32.totalorder %s29, 15
      %p320 = scmp.ne.s32.totalorder %s315, %s317
      %p321 = scmp.eq.s32.totalorder %s29, 0
      %p322 = por %p320, %p321
      %p323 = scmp.ne.s32.totalorder %s315, %s317
      %p324 = scmp.eq.s32.totalorder %s34, 15
      %p325 = por %p323, %p324
      %p326 = scmp.ne.s32.totalorder %s317, %s318
      %p327 = scmp.eq.s32.totalorder %s34, 0
      %p328 = por %p326, %p327
      %p329 = scmp.ne.s32.totalorder %s317, %s318
      %p330 = scmp.eq.s32.totalorder %s35, 15
      %p331 = por %p329, %p330
      %p333 = scmp.ne.s32.totalorder %s318, %s332
      %p334 = scmp.eq.s32.totalorder %s35, 0
      %p335 = por %p333, %p334
      %s337 = sadd.s32 %s336, 1
      %p340 = scmp.eq.s32.totalorder %s29, 15
      %p341 = scmp.ne.s32.totalorder %s336, %s338
      %p342 = scmp.eq.s32.totalorder %s29, 0
      %p343 = por %p341, %p342
      %p344 = scmp.ne.s32.totalorder %s336, %s338
      %p345 = scmp.eq.s32.totalorder %s34, 15
      %p346 = por %p344, %p345
      %p347 = scmp.ne.s32.totalorder %s338, %s339
      %p348 = scmp.eq.s32.totalorder %s34, 0
      %p349 = por %p347, %p348
      %p350 = scmp.ne.s32.totalorder %s338, %s339
      %p351 = scmp.eq.s32.totalorder %s35, 15
      %p352 = por %p350, %p351
      %p354 = scmp.ne.s32.totalorder %s339, %s353
      %p355 = scmp.eq.s32.totalorder %s35, 0
      %p356 = por %p354, %p355
      %s358 = sadd.s32 %s357, 1
      %p361 = scmp.eq.s32.totalorder %s29, 15
      %p362 = scmp.ne.s32.totalorder %s357, %s359
      %p363 = scmp.eq.s32.totalorder %s29, 0
      %p364 = por %p362, %p363
      %p365 = scmp.ne.s32.totalorder %s357, %s359
      %p366 = scmp.eq.s32.totalorder %s34, 15
      %p367 = por %p365, %p366
      %p368 = scmp.ne.s32.totalorder %s359, %s360
      %p369 = scmp.eq.s32.totalorder %s34, 0
      %p370 = por %p368, %p369
      %p371 = scmp.ne.s32.totalorder %s359, %s360
      %p372 = scmp.eq.s32.totalorder %s35, 15
      %p373 = por %p371, %p372
      %p375 = scmp.ne.s32.totalorder %s360, %s374
      %p376 = scmp.eq.s32.totalorder %s35, 0
      %p377 = por %p375, %p376
      %s379 = sadd.s32 %s378, 1
      %p382 = scmp.eq.s32.totalorder %s29, 15
      %p383 = scmp.ne.s32.totalorder %s378, %s380
      %p384 = scmp.eq.s32.totalorder %s29, 0
      %p385 = por %p383, %p384
      %p386 = scmp.ne.s32.totalorder %s378, %s380
      %p387 = scmp.eq.s32.totalorder %s34, 15
      %p388 = por %p386, %p387
      %p389 = scmp.ne.s32.totalorder %s380, %s381
      %p390 = scmp.eq.s32.totalorder %s34, 0
      %p391 = por %p389, %p390
      %p392 = scmp.ne.s32.totalorder %s380, %s381
      %p393 = scmp.eq.s32.totalorder %s35, 15
      %p394 = por %p392, %p393
      %p396 = scmp.ne.s32.totalorder %s381, %s395
      %p397 = scmp.eq.s32.totalorder %s35, 0
      %p398 = por %p396, %p397
      %s399 = ssub.s32 %s29, %s36
      %p400 = scmp.eq.s32.totalorder %s399, 0
      %s402 = sadd.s32 %s401, 1
      %s403 = scalar_select %p400, %s401, %s402
      %p406 = pneg %p400
      %p407 = scmp.eq.s32.totalorder %s29, 15
      %p408 = por %p406, %p407
      %p409 = scmp.ne.s32.totalorder %s401, %s404
      %p410 = scmp.eq.s32.totalorder %s29, 0
      %p411 = por %p409, %p410
      %p412 = scmp.ne.s32.totalorder %s401, %s404
      %p413 = scmp.eq.s32.totalorder %s34, 15
      %p414 = por %p412, %p413
      %p415 = scmp.ne.s32.totalorder %s404, %s405
      %p416 = scmp.eq.s32.totalorder %s34, 0
      %p417 = por %p415, %p416
      %p418 = scmp.ne.s32.totalorder %s404, %s405
      %p419 = scmp.eq.s32.totalorder %s35, 15
      %p420 = por %p418, %p419
      %p422 = scmp.ne.s32.totalorder %s405, %s421
      %p423 = scmp.eq.s32.totalorder %s35, 0
      %p424 = por %p422, %p423
      %p425 = scmp.le.s32.totalorder 1, %s29
      %p426 = scmp.lt.s32.totalorder %s29, 17
      %p427 = pnand %p425, %p426
      %p428 = pneg %p427
      // Predicated region
      $region9: #{tpu_custom_call.1} parent=5 // pred_check
        _
      $region10: #{tpu_custom_call.1} parent=5 // pred_check_branch
        %430 = sbr.rel (%p427) target = $region12
      $region11: #{tpu_custom_call.1} parent=5 // pred_region
        %s431 = ssub.s32 %s29, 1
        // Predicated region
        $region13: #{tpu_custom_call.1} parent=11 // pred_check
          %p432 = pneg %p76
        $region14: #{tpu_custom_call.1} parent=11 // pred_check_branch
          %434 = sbr.rel (%p432) target = $region16
        $region15: #{tpu_custom_call.1} parent=11 // pred_region
          _
        $region16: #{tpu_custom_call.1} parent=11 // pred_fallthru
          _
        // Predicated region
        $region17: #{tpu_custom_call.1} parent=11 // pred_check
          %p435 = pneg %p97
        $region18: #{tpu_custom_call.1} parent=11 // pred_check_branch
          %437 = sbr.rel (%p435) target = $region20
        $region19: #{tpu_custom_call.1} parent=11 // pred_region
          _
        $region20: #{tpu_custom_call.1} parent=11 // pred_fallthru
          _
        // Predicated region
        $region21: #{tpu_custom_call.1} parent=11 // pred_check
          %p438 = pneg %p118
        $region22: #{tpu_custom_call.1} parent=11 // pred_check_branch
          %440 = sbr.rel (%p438) target = $region24
        $region23: #{tpu_custom_call.1} parent=11 // pred_region
          _
        $region24: #{tpu_custom_call.1} parent=11 // pred_fallthru
          _
        // Predicated region
        $region25: #{tpu_custom_call.1} parent=11 // pred_check
          %p441 = pneg %p139
        $region26: #{tpu_custom_call.1} parent=11 // pred_check_branch
          %443 = sbr.rel (%p441) target = $region28
        $region27: #{tpu_custom_call.1} parent=11 // pred_region
          _
        $region28: #{tpu_custom_call.1} parent=11 // pred_fallthru
          _
        // Predicated region
        $region29: #{tpu_custom_call.1} parent=11 // pred_check
          %p444 = pneg %p160
        $region30: #{tpu_custom_call.1} parent=11 // pred_check_branch
          %446 = sbr.rel (%p444) target = $region32
        $region31: #{tpu_custom_call.1} parent=11 // pred_region
          _
        $region32: #{tpu_custom_call.1} parent=11 // pred_fallthru
          _
        // Predicated region
        $region33: #{tpu_custom_call.1} parent=11 // pred_check
          %p447 = pneg %p181
        $region34: #{tpu_custom_call.1} parent=11 // pred_check_branch
          %449 = sbr.rel (%p447) target = $region36
        $region35: #{tpu_custom_call.1} parent=11 // pred_region
          _
        $region36: #{tpu_custom_call.1} parent=11 // pred_fallthru
          _
        // Predicated region
        $region37: #{tpu_custom_call.1} parent=11 // pred_check
          %p450 = pneg %p202
        $region38: #{tpu_custom_call.1} parent=11 // pred_check_branch
          %452 = sbr.rel (%p450) target = $region40
        $region39: #{tpu_custom_call.1} parent=11 // pred_region
          _
        $region40: #{tpu_custom_call.1} parent=11 // pred_fallthru
          _
        // Predicated region
        $region41: #{tpu_custom_call.1} parent=11 // pred_check
          %p453 = pneg %p223
        $region42: #{tpu_custom_call.1} parent=11 // pred_check_branch
          %455 = sbr.rel (%p453) target = $region44
        $region43: #{tpu_custom_call.1} parent=11 // pred_region
          _
        $region44: #{tpu_custom_call.1} parent=11 // pred_fallthru
          _
        // Predicated region
        $region45: #{tpu_custom_call.1} parent=11 // pred_check
          %p456 = pneg %p244
        $region46: #{tpu_custom_call.1} parent=11 // pred_check_branch
          %458 = sbr.rel (%p456) target = $region48
        $region47: #{tpu_custom_call.1} parent=11 // pred_region
          _
        $region48: #{tpu_custom_call.1} parent=11 // pred_fallthru
          _
        // Predicated region
        $region49: #{tpu_custom_call.1} parent=11 // pred_check
          %p459 = pneg %p265
        $region50: #{tpu_custom_call.1} parent=11 // pred_check_branch
          %461 = sbr.rel (%p459) target = $region52
        $region51: #{tpu_custom_call.1} parent=11 // pred_region
          _
        $region52: #{tpu_custom_call.1} parent=11 // pred_fallthru
          _
        // Predicated region
        $region53: #{tpu_custom_call.1} parent=11 // pred_check
          %p462 = pneg %p286
        $region54: #{tpu_custom_call.1} parent=11 // pred_check_branch
          %464 = sbr.rel (%p462) target = $region56
        $region55: #{tpu_custom_call.1} parent=11 // pred_region
          _
        $region56: #{tpu_custom_call.1} parent=11 // pred_fallthru
          _
        // Predicated region
        $region57: #{tpu_custom_call.1} parent=11 // pred_check
          %p465 = pneg %p307
        $region58: #{tpu_custom_call.1} parent=11 // pred_check_branch
          %467 = sbr.rel (%p465) target = $region60
        $region59: #{tpu_custom_call.1} parent=11 // pred_region
          _
        $region60: #{tpu_custom_call.1} parent=11 // pred_fallthru
          _
        // Predicated region
        $region61: #{tpu_custom_call.1} parent=11 // pred_check
          %p468 = pneg %p328
        $region62: #{tpu_custom_call.1} parent=11 // pred_check_branch
          %470 = sbr.rel (%p468) target = $region64
        $region63: #{tpu_custom_call.1} parent=11 // pred_region
          _
        $region64: #{tpu_custom_call.1} parent=11 // pred_fallthru
          _
        // Predicated region
        $region65: #{tpu_custom_call.1} parent=11 // pred_check
          %p471 = pneg %p349
        $region66: #{tpu_custom_call.1} parent=11 // pred_check_branch
          %473 = sbr.rel (%p471) target = $region68
        $region67: #{tpu_custom_call.1} parent=11 // pred_region
          _
        $region68: #{tpu_custom_call.1} parent=11 // pred_fallthru
          _
        // Predicated region
        $region69: #{tpu_custom_call.1} parent=11 // pred_check
          %p474 = pneg %p370
        $region70: #{tpu_custom_call.1} parent=11 // pred_check_branch
          %476 = sbr.rel (%p474) target = $region72
        $region71: #{tpu_custom_call.1} parent=11 // pred_region
          _
        $region72: #{tpu_custom_call.1} parent=11 // pred_fallthru
          _
        // Predicated region
        $region73: #{tpu_custom_call.1} parent=11 // pred_check
          %p477 = pneg %p391
        $region74: #{tpu_custom_call.1} parent=11 // pred_check_branch
          %479 = sbr.rel (%p477) target = $region76
        $region75: #{tpu_custom_call.1} parent=11 // pred_region
          _
        $region76: #{tpu_custom_call.1} parent=11 // pred_fallthru
          _
      $region12: #{tpu_custom_call.1} parent=5 // pred_fallthru
        _
      %p480 = scmp.lt.s32.totalorder %s29, 16
      // Predicated region
      $region77: #{tpu_custom_call.1} parent=5 // pred_check
        %p481 = pneg %p480
      $region78: #{tpu_custom_call.1} parent=5 // pred_check_branch
        %483 = sbr.rel (%p481) target = $region80
      $region79: #{tpu_custom_call.1} parent=5 // pred_region
        // Predicated region
        $region81: #{tpu_custom_call.1} parent=79 // pred_check
          %p484 = pneg %p49
        $region82: #{tpu_custom_call.1} parent=79 // pred_check_branch
          %486 = sbr.rel (%p484) target = $region84
        $region83: #{tpu_custom_call.1} parent=79 // pred_region
          %s487 = sand.u32 %s39, 1
          %s488 = scalar_lea.sflag [#allocation3], %s487
          %s489 = sand.u32 %s39, 1
          %s490 = smul.addr %s489, 24
          %s491 = scalar_lea.vmem [#allocation2], %s490
          %493 = vsyncadd %s488, 0
          %s494 = smul.addr %s29, 3
          %s495 = smul.addr %s494, 8
          %s496 = scalar_lea.hbm %s0, %s495
          %s497 = sshll.u32 %s496, 4
          %s498 = int_to_ptr.hbm [resolvable:$true] %s497
          %s499 = sshll.u32 %s491, 4
          %s500 = int_to_ptr.vmem [resolvable:$true] %s499
          %505 = dma.hbm_to_vmem [thread:$0]  %s498, 384, %s500, %s488, 128, 128, 8
        $region84: #{tpu_custom_call.1} parent=79 // pred_fallthru
          _
      $region80: #{tpu_custom_call.1} parent=5 // pred_fallthru
        _
      %p506 = scmp.le.s32.totalorder 1, %s29
      %p507 = scmp.lt.s32.totalorder %s29, 17
      %p508 = pnand %p506, %p507
      %p509 = pneg %p508
      // Predicated region
      $region85: #{tpu_custom_call.1} parent=5 // pred_check
        _
      $region86: #{tpu_custom_call.1} parent=5 // pred_check_branch
        %511 = sbr.rel (%p508) target = $region88
      $region87: #{tpu_custom_call.1} parent=5 // pred_region
        %s512 = ssub.s32 %s29, 1
        %s513 = sand.u32 %s42, 1
        %s514 = scalar_lea.sflag [#allocation3], %s513
        %s515 = sand.u32 %s42, 1
        %s516 = smul.addr %s515, 24
        %s517 = scalar_lea.vmem [#allocation2], %s516
        // Predicated region
        $region89: #{tpu_custom_call.1} parent=87 // pred_check
          %p518 = pneg %p55
        $region90: #{tpu_custom_call.1} parent=87 // pred_check_branch
          %520 = sbr.rel (%p518) target = $region92
        $region91: #{tpu_custom_call.1} parent=87 // pred_region
          %522 = dma.done %s514, 384
        $region92: #{tpu_custom_call.1} parent=87 // pred_fallthru
          _
        %s523 = sand.u32 %s42, 1
        %s524 = scalar_lea.sflag [#allocation3], %s523
        %s525 = sand.u32 %s42, 1
        %s526 = smul.addr %s525, 24
        %s527 = scalar_lea.vmem [#allocation2], %s526
        %p528 = pneg %p55
        %p529 = pneg %p52
        %p530 = pneg %p76
        %p531 = pneg %p73
        %p532 = pneg %p97
        %p533 = pneg %p94
        %p534 = pneg %p118
        %p535 = pneg %p115
        %p536 = pneg %p139
        %p537 = pneg %p136
        %p538 = pneg %p160
        %p539 = pneg %p157
        %p540 = pneg %p181
        %p541 = pneg %p178
        %p542 = pneg %p202
        %p543 = pneg %p199
        %p544 = pneg %p223
        %p545 = pneg %p220
        %p546 = pneg %p244
        %p547 = pneg %p241
        %p548 = pneg %p265
        %p549 = pneg %p262
        %p550 = pneg %p286
        %p551 = pneg %p283
        %p552 = pneg %p307
        %p553 = pneg %p304
        %p554 = pneg %p328
        %p555 = pneg %p325
        %p556 = pneg %p349
        %p557 = pneg %p346
        %p558 = pneg %p370
        %p559 = pneg %p367
        %p560 = pneg %p391
        %p561 = pneg %p388
        %p562 = pneg %p417
        %p563 = pneg %p414
        %s564 = sand.u32 %s404, 1
        %s565 = scalar_lea.sflag [#allocation4], %s564
        %s566 = sand.u32 %s404, 1
        %s567 = smul.addr %s566, 8
        %s568 = scalar_lea.vmem [#allocation5], %s567
        %v569 = vld [vmem:[%s517] sm:$0xff]
        %v570 = vld [vmem:[%s517 + $0x8] sm:$0xff]
        %v571 = vld [vmem:[%s517 + $0x10] sm:$0xff]
        %v572 = vld [vmem:[%s1] sm:$0xff]
        %v573 = vld [vmem:[%s2] sm:$0x1]
        %v574 = vld [vmem:[%s2 + $0x1] sm:$0x1]
        %vm575 = vcmask 261120
        %v576 = vsel %vm575, %v569, 0.0
        %577 = vadd.xlane.f32.xlu0 %v576
        %v578 = vpop.xlane.xlu0 %577
        %v579 = vsel %vm575, %v570, 0.0
        %580 = vadd.xlane.f32.xlu0 %v579
        %v581 = vpop.xlane.xlu0 %580
        %v582 = vsel %vm575, %v571, 0.0
        %583 = vadd.xlane.f32.xlu0 %v582
        %v584 = vpop.xlane.xlu0 %583
        %v585 = vrcp.pop 32.0
        %v586 = vmul.f32 32.0, %v585
        %v587 = vsub.f32 1.0, %v586
        %v588 = vmul.f32 %v585, %v587
        %v589 = vadd.f32 %v585, %v588
        %vm590 = vweird.f32 %v585
        %v591 = vsel %vm590, %v585, %v589
        %v592 = vmul.f32 %v578, %v591
        %v593 = vmul.f32 %v581, %v591
        %v594 = vmul.f32 %v584, %v591
        %v595 = vsub.f32 %v569, %v592
        %v596 = vsub.f32 %v570, %v593
        %v597 = vsub.f32 %v571, %v594
        %v598 = vmul.f32 %v595, %v595
        %v599 = vmul.f32 %v596, %v596
        %v600 = vmul.f32 %v597, %v597
        %v601 = vsel %vm575, %v598, 0.0
        %602 = vadd.xlane.f32.xlu0 %v601
        %v603 = vpop.xlane.xlu0 %602
        %v604 = vsel %vm575, %v599, 0.0
        %605 = vadd.xlane.f32.xlu0 %v604
        %v606 = vpop.xlane.xlu0 %605
        %v607 = vsel %vm575, %v600, 0.0
        %608 = vadd.xlane.f32.xlu0 %v607
        %v609 = vpop.xlane.xlu0 %608
        %v610 = vmul.f32 %v603, %v591
        %v611 = vmul.f32 %v606, %v591
        %v612 = vmul.f32 %v609, %v591
        %v613 = vadd.f32 %v610, 1e-05
        %v614 = vadd.f32 %v611, 1e-05
        %v615 = vadd.f32 %v612, 1e-05
        %v616 = vrsqrt.pop %v613
        %v617 = vmul.f32 %v616, %v613
        %v618 = vmul.f32 %v617, %v616
        %v619 = vmul.f32 0.5, %v618
        %v620 = vsub.f32 1.5, %v619
        %v621 = vmul.f32 %v616, %v620
        %vm622 = vweird.f32 %v613
        %vm623 = vweird.f32 %v616
        %vm624 = vmor %vm622, %vm623
        %v625 = vsel %vm624, %v616, %v621
        %v626 = vrsqrt.pop %v614
        %v627 = vmul.f32 %v626, %v614
        %v628 = vmul.f32 %v627, %v626
        %v629 = vmul.f32 0.5, %v628
        %v630 = vsub.f32 1.5, %v629
        %v631 = vmul.f32 %v626, %v630
        %vm632 = vweird.f32 %v614
        %vm633 = vweird.f32 %v626
        %vm634 = vmor %vm632, %vm633
        %v635 = vsel %vm634, %v626, %v631
        %v636 = vrsqrt.pop %v615
        %v637 = vmul.f32 %v636, %v615
        %v638 = vmul.f32 %v637, %v636
        %v639 = vmul.f32 0.5, %v638
        %v640 = vsub.f32 1.5, %v639
        %v641 = vmul.f32 %v636, %v640
        %vm642 = vweird.f32 %v615
        %vm643 = vweird.f32 %v636
        %vm644 = vmor %vm642, %vm643
        %v645 = vsel %vm644, %v636, %v641
        %v646 = vmul.f32 %v595, %v625
        %v647 = vmul.f32 %v596, %v635
        %v648 = vmul.f32 %v597, %v645
        %v649 = vperm.slane %v573, 0
        %v650 = vmul.f32 %v646, %v649
        %v651 = vmul.f32 %v647, %v649
        %v652 = vmul.f32 %v648, %v649
        %v653 = vperm.slane %v574, 0
        %v654 = vadd.f32 %v650, %v653
        %v655 = vadd.f32 %v651, %v653
        %v656 = vadd.f32 %v652, %v653
        %v657 = vld [vmem:[%s3] sm:$0x1]
        %v658 = vld [vmem:[%s3 + $0x1] sm:$0x1]
        %v659 = vsel %vm575, %v572, 0.0
        %660 = vadd.xlane.f32.xlu0 %v659
        %v661 = vpop.xlane.xlu0 %660
        %v662 = vmul.f32 %v661, %v591
        %v663 = vsub.f32 %v572, %v662
        %v664 = vmul.f32 %v663, %v663
        %v665 = vsel %vm575, %v664, 0.0
        %666 = vadd.xlane.f32.xlu0 %v665
        %v667 = vpop.xlane.xlu0 %666
        %v668 = vmul.f32 %v667, %v591
        %v669 = vadd.f32 %v668, 1e-05
        %v670 = vrsqrt.pop %v669
        %v671 = vmul.f32 %v670, %v669
        %v672 = vmul.f32 %v671, %v670
        %v673 = vmul.f32 0.5, %v672
        %v674 = vsub.f32 1.5, %v673
        %v675 = vmul.f32 %v670, %v674
        %vm676 = vweird.f32 %v669
        %vm677 = vweird.f32 %v670
        %vm678 = vmor %vm676, %vm677
        %v679 = vsel %vm678, %v670, %v675
        %v680 = vmul.f32 %v663, %v679
        %v681 = vperm.slane %v657, 0
        %v682 = vmul.f32 %v680, %v681
        %v683 = vperm.slane %v658, 0
        %v684 = vadd.f32 %v682, %v683
        %v685 = vld [vmem:[%s4] sm:$0xff]
        %v686 = vld [vmem:[%s4 + $0x8] sm:$0xff]
        %v687 = vld [vmem:[%s4 + $0x10] sm:$0xff]
        %v688 = vld [vmem:[%s4 + $0x18] sm:$0xff]
        %v689 = vld [vmem:[%s5] sm:$0x1]
        %v691 = vperm.slane %v689, 0
        %v694 = vsel %vm575, %v684, 0
        %696 = vmatpush.msra.mxu0 0.0
        %697 = vmatpush.msra.mxu0 0.0
        %698 = vmatpush.msra.mxu0 0.0
        %699 = vmatpush.msra.mxu0 0.0
        %700 = vmatpush.msra.mxu0 0.0
        %701 = vmatpush.msra.mxu0 0.0
        %702 = vmatpush.msra.mxu0 0.0
        %703 = vmatpush.msra.mxu0 0.0
        %704 = vmatpush.msra.mxu0 0.0
        %705 = vmatpush.msra.mxu0 0.0
        %706 = vmatpush.msra.mxu0 0.0
        %707 = vmatpush.msra.mxu0 0.0
        %708 = vmatpush.msra.mxu0 %v688
        %709 = vmatpush.msra.mxu0 %v687
        %710 = vmatpush.msra.mxu0 %v686
        %711 = vmatpush.msra.mxu0 %v685
        %712 = vmatmul.f32.gmra.mxu0 %v694
        %v713 = vpop.f32.mrf.mxu0
        %v714 = vadd.f32 %v691, %v713
        %715 = vdwg.mxu0
        %v716 = vmul.f32 %v714, 0.35355338
        %v717 = vld [vmem:[%s6] sm:$0xff]
        %v718 = vld [vmem:[%s6 + $0x8] sm:$0xff]
        %v719 = vld [vmem:[%s6 + $0x10] sm:$0xff]
        %v720 = vld [vmem:[%s6 + $0x18] sm:$0xff]
        %v721 = vld [vmem:[%s7] sm:$0x1]
        %v723 = vperm.slane %v721, 0
        %v726 = vsel %vm575, %v654, 0
        %v729 = vsel %vm575, %v655, 0
        %v732 = vsel %vm575, %v656, 0
        %734 = vmatpush.msra.mxu0 0.0
        %735 = vmatpush.msra.mxu0 0.0
        %736 = vmatpush.msra.mxu0 0.0
        %737 = vmatpush.msra.mxu0 0.0
        %738 = vmatpush.msra.mxu0 0.0
        %739 = vmatpush.msra.mxu0 0.0
        %740 = vmatpush.msra.mxu0 0.0
        %741 = vmatpush.msra.mxu0 0.0
        %742 = vmatpush.msra.mxu0 0.0
        %743 = vmatpush.msra.mxu0 0.0
        %744 = vmatpush.msra.mxu0 0.0
        %745 = vmatpush.msra.mxu0 0.0
        %746 = vmatpush.msra.mxu0 %v720
        %747 = vmatpush.msra.mxu0 %v719
        %748 = vmatpush.msra.mxu0 %v718
        %749 = vmatpush.msra.mxu0 %v717
        %750 = vmatmul.f32.gmra.mxu0 %v726
        %v751 = vpop.f32.mrf.mxu0
        %v752 = vadd.f32 %v723, %v751
        %753 = vmatmul.f32.gmra.mxu0 %v729
        %v754 = vpop.f32.mrf.mxu0
        %v755 = vadd.f32 %v723, %v754
        %756 = vmatmul.f32.gmra.mxu0 %v732
        %v757 = vpop.f32.mrf.mxu0
        %v758 = vadd.f32 %v723, %v757
        %759 = vdwg.mxu0
        %v760 = vld [vmem:[%s8] sm:$0xff]
        %v761 = vld [vmem:[%s8 + $0x8] sm:$0xff]
        %v762 = vld [vmem:[%s8 + $0x10] sm:$0xff]
        %v763 = vld [vmem:[%s8 + $0x18] sm:$0xff]
        %v764 = vld [vmem:[%s9] sm:$0x1]
        %v766 = vperm.slane %v764, 0
        %768 = vmatpush.msra.mxu0 0.0
        %769 = vmatpush.msra.mxu0 0.0
        %770 = vmatpush.msra.mxu0 0.0
        %771 = vmatpush.msra.mxu0 0.0
        %772 = vmatpush.msra.mxu0 0.0
        %773 = vmatpush.msra.mxu0 0.0
        %774 = vmatpush.msra.mxu0 0.0
        %775 = vmatpush.msra.mxu0 0.0
        %776 = vmatpush.msra.mxu0 0.0
        %777 = vmatpush.msra.mxu0 0.0
        %778 = vmatpush.msra.mxu0 0.0
        %779 = vmatpush.msra.mxu0 0.0
        %780 = vmatpush.msra.mxu0 %v763
        %781 = vmatpush.msra.mxu0 %v762
        %782 = vmatpush.msra.mxu0 %v761
        %783 = vmatpush.msra.mxu0 %v760
        %784 = vmatmul.f32.gmra.mxu0 %v726
        %v785 = vpop.f32.mrf.mxu0
        %v786 = vadd.f32 %v766, %v785
        %787 = vmatmul.f32.gmra.mxu0 %v729
        %v788 = vpop.f32.mrf.mxu0
        %v789 = vadd.f32 %v766, %v788
        %790 = vmatmul.f32.gmra.mxu0 %v732
        %v791 = vpop.f32.mrf.mxu0
        %v792 = vadd.f32 %v766, %v791
        %793 = vdwg.mxu0
        %vm794 = vcmask 64512
        %v796 = vsel %vm794, %v716, 0
        %v799 = vsel %vm794, %v752, 0
        %v802 = vsel %vm794, %v755, 0
        %v805 = vsel %vm794, %v758, 0
        %807 = vmatpush.xpose.msra.mxu0 0.0
        %808 = vmatpush.xpose.msra.mxu0 0.0
        %809 = vmatpush.xpose.msra.mxu0 0.0
        %810 = vmatpush.xpose.msra.mxu0 0.0
        %811 = vmatpush.xpose.msra.mxu0 0.0
        %812 = vmatpush.xpose.msra.mxu0 0.0
        %813 = vmatpush.xpose.msra.mxu0 0.0
        %814 = vmatpush.xpose.msra.mxu0 0.0
        %815 = vmatpush.xpose.msra.mxu0 0.0
        %816 = vmatpush.xpose.msra.mxu0 0.0
        %817 = vmatpush.xpose.msra.mxu0 0.0
        %818 = vmatpush.xpose.msra.mxu0 0.0
        %819 = vmatpush.xpose.msra.mxu0 0.0
        %820 = vmatpush.xpose.msra.mxu0 %v805
        %821 = vmatpush.xpose.msra.mxu0 %v802
        %822 = vmatpush.xpose.msra.mxu0 %v799
        %823 = vmatmul.f32.gmra.mxu0 %v796
        %v824 = vpop.f32.mrf.mxu0
        %v825 = vadd.f32 0.0, %v824
        %826 = vdwg.mxu0
        %vm827 = vcmask 195584
        %v828 = vsel %vm827, %v825, -inf
        %829 = vmax.xlane.f32.xlu0 %v828
        %v830 = vpop.xlane.xlu0 %829
        %v831 = vsub.f32 %v825, %v830
        %v832 = vmul.f32 %v831, 1.442695
        %v833 = vpow.pop %v832
        %v834 = vsel %vm827, %v833, 0.0
        %835 = vadd.xlane.f32.xlu0 %v834
        %v836 = vpop.xlane.xlu0 %835
        %v837 = vrcp.pop %v836
        %v838 = vmul.f32 %v836, %v837
        %v839 = vsub.f32 1.0, %v838
        %v840 = vmul.f32 %v837, %v839
        %v841 = vadd.f32 %v837, %v840
        %vm842 = vweird.f32 %v836
        %vm843 = vweird.f32 %v837
        %vm844 = vmor %vm842, %vm843
        %v845 = vsel %vm844, %v837, %v841
        %v846 = vand.u32 2147483647, %v836
        %vm847 = vcmp.eq.f32.partialorder %v846, 8.507059e+37
        %v848 = vand.u32 %v836, 2147483648
        %v849 = vor.u32 1.1754944e-38, %v848
        %v850 = vsel %vm847, %v849, %v845
        %v851 = vmul.f32 %v833, %v850
        %v853 = vsel %vm827, %v851, 0
        %855 = vmatpush.msra.mxu0 0.0
        %856 = vmatpush.msra.mxu0 0.0
        %857 = vmatpush.msra.mxu0 0.0
        %858 = vmatpush.msra.mxu0 0.0
        %859 = vmatpush.msra.mxu0 0.0
        %860 = vmatpush.msra.mxu0 0.0
        %861 = vmatpush.msra.mxu0 0.0
        %862 = vmatpush.msra.mxu0 0.0
        %863 = vmatpush.msra.mxu0 0.0
        %864 = vmatpush.msra.mxu0 0.0
        %865 = vmatpush.msra.mxu0 0.0
        %866 = vmatpush.msra.mxu0 0.0
        %867 = vmatpush.msra.mxu0 0.0
        %868 = vmatpush.msra.mxu0 %v792
        %869 = vmatpush.msra.mxu0 %v789
        %870 = vmatpush.msra.mxu0 %v786
        %871 = vmatmul.f32.gmra.mxu0 %v853
        %v872 = vpop.f32.mrf.mxu0
        %v873 = vadd.f32 0.0, %v872
        %874 = vdwg.mxu0
        %v875 = vld [vmem:[%s10] sm:$0xff]
        %s876 = scalar_lea.vmem %s4, 32
        %v877 = vld [vmem:[%s876] sm:$0xff]
        %v878 = vld [vmem:[%s876 + $0x8] sm:$0xff]
        %v879 = vld [vmem:[%s876 + $0x10] sm:$0xff]
        %v880 = vld [vmem:[%s876 + $0x18] sm:$0xff]
        %s881 = scalar_lea.vmem %s5, 1
        %v882 = vld [vmem:[%s881] sm:$0x1]
        %v884 = vperm.slane %v882, 0
        %886 = vmatpush.msra.mxu0 0.0
        %887 = vmatpush.msra.mxu0 0.0
        %888 = vmatpush.msra.mxu0 0.0
        %889 = vmatpush.msra.mxu0 0.0
        %890 = vmatpush.msra.mxu0 0.0
        %891 = vmatpush.msra.mxu0 0.0
        %892 = vmatpush.msra.mxu0 0.0
        %893 = vmatpush.msra.mxu0 0.0
        %894 = vmatpush.msra.mxu0 0.0
        %895 = vmatpush.msra.mxu0 0.0
        %896 = vmatpush.msra.mxu0 0.0
        %897 = vmatpush.msra.mxu0 0.0
        %898 = vmatpush.msra.mxu0 %v880
        %899 = vmatpush.msra.mxu0 %v879
        %900 = vmatpush.msra.mxu0 %v878
        %901 = vmatpush.msra.mxu0 %v877
        %902 = vmatmul.f32.gmra.mxu0 %v694
        %v903 = vpop.f32.mrf.mxu0
        %v904 = vadd.f32 %v884, %v903
        %905 = vdwg.mxu0
        %v906 = vmul.f32 %v904, 0.35355338
        %s907 = scalar_lea.vmem %s6, 32
        %v908 = vld [vmem:[%s907] sm:$0xff]
        %v909 = vld [vmem:[%s907 + $0x8] sm:$0xff]
        %v910 = vld [vmem:[%s907 + $0x10] sm:$0xff]
        %v911 = vld [vmem:[%s907 + $0x18] sm:$0xff]
        %s912 = scalar_lea.vmem %s7, 1
        %v913 = vld [vmem:[%s912] sm:$0x1]
        %v915 = vperm.slane %v913, 0
        %917 = vmatpush.msra.mxu0 0.0
        %918 = vmatpush.msra.mxu0 0.0
        %919 = vmatpush.msra.mxu0 0.0
        %920 = vmatpush.msra.mxu0 0.0
        %921 = vmatpush.msra.mxu0 0.0
        %922 = vmatpush.msra.mxu0 0.0
        %923 = vmatpush.msra.mxu0 0.0
        %924 = vmatpush.msra.mxu0 0.0
        %925 = vmatpush.msra.mxu0 0.0
        %926 = vmatpush.msra.mxu0 0.0
        %927 = vmatpush.msra.mxu0 0.0
        %928 = vmatpush.msra.mxu0 0.0
        %929 = vmatpush.msra.mxu0 %v911
        %930 = vmatpush.msra.mxu0 %v910
        %931 = vmatpush.msra.mxu0 %v909
        %932 = vmatpush.msra.mxu0 %v908
        %933 = vmatmul.f32.gmra.mxu0 %v726
        %v934 = vpop.f32.mrf.mxu0
        %v935 = vadd.f32 %v915, %v934
        %936 = vmatmul.f32.gmra.mxu0 %v729
        %v937 = vpop.f32.mrf.mxu0
        %v938 = vadd.f32 %v915, %v937
        %939 = vmatmul.f32.gmra.mxu0 %v732
        %v940 = vpop.f32.mrf.mxu0
        %v941 = vadd.f32 %v915, %v940
        %942 = vdwg.mxu0
        %s943 = scalar_lea.vmem %s8, 32
        %v944 = vld [vmem:[%s943] sm:$0xff]
        %v945 = vld [vmem:[%s943 + $0x8] sm:$0xff]
        %v946 = vld [vmem:[%s943 + $0x10] sm:$0xff]
        %v947 = vld [vmem:[%s943 + $0x18] sm:$0xff]
        %s948 = scalar_lea.vmem %s9, 1
        %v949 = vld [vmem:[%s948] sm:$0x1]
        %v951 = vperm.slane %v949, 0
        %953 = vmatpush.msra.mxu0 0.0
        %954 = vmatpush.msra.mxu0 0.0
        %955 = vmatpush.msra.mxu0 0.0
        %956 = vmatpush.msra.mxu0 0.0
        %957 = vmatpush.msra.mxu0 0.0
        %958 = vmatpush.msra.mxu0 0.0
        %959 = vmatpush.msra.mxu0 0.0
        %960 = vmatpush.msra.mxu0 0.0
        %961 = vmatpush.msra.mxu0 0.0
        %962 = vmatpush.msra.mxu0 0.0
        %963 = vmatpush.msra.mxu0 0.0
        %964 = vmatpush.msra.mxu0 0.0
        %965 = vmatpush.msra.mxu0 %v947
        %966 = vmatpush.msra.mxu0 %v946
        %967 = vmatpush.msra.mxu0 %v945
        %968 = vmatpush.msra.mxu0 %v944
        %969 = vmatmul.f32.gmra.mxu0 %v726
        %v970 = vpop.f32.mrf.mxu0
        %v971 = vadd.f32 %v951, %v970
        %972 = vmatmul.f32.gmra.mxu0 %v729
        %v973 = vpop.f32.mrf.mxu0
        %v974 = vadd.f32 %v951, %v973
        %975 = vmatmul.f32.gmra.mxu0 %v732
        %v976 = vpop.f32.mrf.mxu0
        %v977 = vadd.f32 %v951, %v976
        %978 = vdwg.mxu0
        %v980 = vsel %vm794, %v906, 0
        %v983 = vsel %vm794, %v935, 0
        %v986 = vsel %vm794, %v938, 0
        %v989 = vsel %vm794, %v941, 0
        %991 = vmatpush.xpose.msra.mxu0 0.0
        %992 = vmatpush.xpose.msra.mxu0 0.0
        %993 = vmatpush.xpose.msra.mxu0 0.0
        %994 = vmatpush.xpose.msra.mxu0 0.0
        %995 = vmatpush.xpose.msra.mxu0 0.0
        %996 = vmatpush.xpose.msra.mxu0 0.0
        %997 = vmatpush.xpose.msra.mxu0 0.0
        %998 = vmatpush.xpose.msra.mxu0 0.0
        %999 = vmatpush.xpose.msra.mxu0 0.0
        %1000 = vmatpush.xpose.msra.mxu0 0.0
        %1001 = vmatpush.xpose.msra.mxu0 0.0
        %1002 = vmatpush.xpose.msra.mxu0 0.0
        %1003 = vmatpush.xpose.msra.mxu0 0.0
        %1004 = vmatpush.xpose.msra.mxu0 %v989
        %1005 = vmatpush.xpose.msra.mxu0 %v986
        %1006 = vmatpush.xpose.msra.mxu0 %v983
        %1007 = vmatmul.f32.gmra.mxu0 %v980
        %v1008 = vpop.f32.mrf.mxu0
        %v1009 = vadd.f32 0.0, %v1008
        %1010 = vdwg.mxu0
        %v1011 = vsel %vm827, %v1009, -inf
        %1012 = vmax.xlane.f32.xlu0 %v1011
        %v1013 = vpop.xlane.xlu0 %1012
        %v1014 = vsub.f32 %v1009, %v1013
        %v1015 = vmul.f32 %v1014, 1.442695
        %v1016 = vpow.pop %v1015
        %v1017 = vsel %vm827, %v1016, 0.0
        %1018 = vadd.xlane.f32.xlu0 %v1017
        %v1019 = vpop.xlane.xlu0 %1018
        %v1020 = vrcp.pop %v1019
        %v1021 = vmul.f32 %v1019, %v1020
        %v1022 = vsub.f32 1.0, %v1021
        %v1023 = vmul.f32 %v1020, %v1022
        %v1024 = vadd.f32 %v1020, %v1023
        %vm1025 = vweird.f32 %v1019
        %vm1026 = vweird.f32 %v1020
        %vm1027 = vmor %vm1025, %vm1026
        %v1028 = vsel %vm1027, %v1020, %v1024
        %v1029 = vand.u32 2147483647, %v1019
        %vm1030 = vcmp.eq.f32.partialorder %v1029, 8.507059e+37
        %v1031 = vand.u32 %v1019, 2147483648
        %v1032 = vor.u32 1.1754944e-38, %v1031
        %v1033 = vsel %vm1030, %v1032, %v1028
        %v1034 = vmul.f32 %v1016, %v1033
        %v1036 = vsel %vm827, %v1034, 0
        %1038 = vmatpush.msra.mxu0 0.0
        %1039 = vmatpush.msra.mxu0 0.0
        %1040 = vmatpush.msra.mxu0 0.0
        %1041 = vmatpush.msra.mxu0 0.0
        %1042 = vmatpush.msra.mxu0 0.0
        %1043 = vmatpush.msra.mxu0 0.0
        %1044 = vmatpush.msra.mxu0 0.0
        %1045 = vmatpush.msra.mxu0 0.0
        %1046 = vmatpush.msra.mxu0 0.0
        %1047 = vmatpush.msra.mxu0 0.0
        %1048 = vmatpush.msra.mxu0 0.0
        %1049 = vmatpush.msra.mxu0 0.0
        %1050 = vmatpush.msra.mxu0 0.0
        %1051 = vmatpush.msra.mxu0 %v977
        %1052 = vmatpush.msra.mxu0 %v974
        %1053 = vmatpush.msra.mxu0 %v971
        %1054 = vmatmul.f32.gmra.mxu0 %v1036
        %v1055 = vpop.f32.mrf.mxu0
        %v1056 = vadd.f32 0.0, %v1055
        %1057 = vdwg.mxu0
        %s1058 = scalar_lea.vmem %s10, 8
        %v1059 = vld [vmem:[%s1058] sm:$0xff]
        %v1061 = vsel %vm794, %v1056, 0
        %1063 = vmatpush.msra.mxu0 0.0
        %1064 = vmatpush.msra.mxu0 0.0
        %1065 = vmatpush.msra.mxu0 0.0
        %1066 = vmatpush.msra.mxu0 0.0
        %1067 = vmatpush.msra.mxu0 0.0
        %1068 = vmatpush.msra.mxu0 0.0
        %1069 = vmatpush.msra.mxu0 0.0
        %1070 = vmatpush.msra.mxu0 0.0
        %1071 = vmatpush.msra.mxu0 0.0
        %1072 = vmatpush.msra.mxu0 0.0
        %1073 = vmatpush.msra.mxu0 0.0
        %1074 = vmatpush.msra.mxu0 0.0
        %1075 = vmatpush.msra.mxu0 0.0
        %1076 = vmatpush.msra.mxu0 0.0
        %1077 = vmatpush.msra.mxu0 0.0
        %1078 = vmatpush.msra.mxu0 %v1059
        %1079 = vmatmul.f32.gmra.mxu0 %v1061
        %v1080 = vpop.f32.mrf.mxu0
        %v1081 = vadd.f32 0.0, %v1080
        %1082 = vdwg.mxu0
        %v1084 = vsel %vm794, %v873, 0
        %1086 = vmatpush.msra.mxu0 0.0
        %1087 = vmatpush.msra.mxu0 0.0
        %1088 = vmatpush.msra.mxu0 0.0
        %1089 = vmatpush.msra.mxu0 0.0
        %1090 = vmatpush.msra.mxu0 0.0
        %1091 = vmatpush.msra.mxu0 0.0
        %1092 = vmatpush.msra.mxu0 0.0
        %1093 = vmatpush.msra.mxu0 0.0
        %1094 = vmatpush.msra.mxu0 0.0
        %1095 = vmatpush.msra.mxu0 0.0
        %1096 = vmatpush.msra.mxu0 0.0
        %1097 = vmatpush.msra.mxu0 0.0
        %1098 = vmatpush.msra.mxu0 0.0
        %1099 = vmatpush.msra.mxu0 0.0
        %1100 = vmatpush.msra.mxu0 0.0
        %1101 = vmatpush.msra.mxu0 %v875
        %1102 = vmatmul.f32.gmra.mxu0 %v1084
        %v1103 = vpop.f32.mrf.mxu0
        %v1104 = vadd.f32 %v1081, %v1103
        %1105 = vdwg.mxu0
        %s1106 = scalar_lea.vmem %s4, 64
        %v1107 = vld [vmem:[%s1106] sm:$0xff]
        %v1108 = vld [vmem:[%s1106 + $0x8] sm:$0xff]
        %v1109 = vld [vmem:[%s1106 + $0x10] sm:$0xff]
        %v1110 = vld [vmem:[%s1106 + $0x18] sm:$0xff]
        %s1111 = scalar_lea.vmem %s5, 2
        %v1112 = vld [vmem:[%s1111] sm:$0x1]
        %v1114 = vperm.slane %v1112, 0
        %1116 = vmatpush.msra.mxu0 0.0
        %1117 = vmatpush.msra.mxu0 0.0
        %1118 = vmatpush.msra.mxu0 0.0
        %1119 = vmatpush.msra.mxu0 0.0
        %1120 = vmatpush.msra.mxu0 0.0
        %1121 = vmatpush.msra.mxu0 0.0
        %1122 = vmatpush.msra.mxu0 0.0
        %1123 = vmatpush.msra.mxu0 0.0
        %1124 = vmatpush.msra.mxu0 0.0
        %1125 = vmatpush.msra.mxu0 0.0
        %1126 = vmatpush.msra.mxu0 0.0
        %1127 = vmatpush.msra.mxu0 0.0
        %1128 = vmatpush.msra.mxu0 %v1110
        %1129 = vmatpush.msra.mxu0 %v1109
        %1130 = vmatpush.msra.mxu0 %v1108
        %1131 = vmatpush.msra.mxu0 %v1107
        %1132 = vmatmul.f32.gmra.mxu0 %v694
        %v1133 = vpop.f32.mrf.mxu0
        %v1134 = vadd.f32 %v1114, %v1133
        %1135 = vdwg.mxu0
        %v1136 = vmul.f32 %v1134, 0.35355338
        %s1137 = scalar_lea.vmem %s6, 64
        %v1138 = vld [vmem:[%s1137] sm:$0xff]
        %v1139 = vld [vmem:[%s1137 + $0x8] sm:$0xff]
        %v1140 = vld [vmem:[%s1137 + $0x10] sm:$0xff]
        %v1141 = vld [vmem:[%s1137 + $0x18] sm:$0xff]
        %s1142 = scalar_lea.vmem %s7, 2
        %v1143 = vld [vmem:[%s1142] sm:$0x1]
        %v1145 = vperm.slane %v1143, 0
        %1147 = vmatpush.msra.mxu0 0.0
        %1148 = vmatpush.msra.mxu0 0.0
        %1149 = vmatpush.msra.mxu0 0.0
        %1150 = vmatpush.msra.mxu0 0.0
        %1151 = vmatpush.msra.mxu0 0.0
        %1152 = vmatpush.msra.mxu0 0.0
        %1153 = vmatpush.msra.mxu0 0.0
        %1154 = vmatpush.msra.mxu0 0.0
        %1155 = vmatpush.msra.mxu0 0.0
        %1156 = vmatpush.msra.mxu0 0.0
        %1157 = vmatpush.msra.mxu0 0.0
        %1158 = vmatpush.msra.mxu0 0.0
        %1159 = vmatpush.msra.mxu0 %v1141
        %1160 = vmatpush.msra.mxu0 %v1140
        %1161 = vmatpush.msra.mxu0 %v1139
        %1162 = vmatpush.msra.mxu0 %v1138
        %1163 = vmatmul.f32.gmra.mxu0 %v726
        %v1164 = vpop.f32.mrf.mxu0
        %v1165 = vadd.f32 %v1145, %v1164
        %1166 = vmatmul.f32.gmra.mxu0 %v729
        %v1167 = vpop.f32.mrf.mxu0
        %v1168 = vadd.f32 %v1145, %v1167
        %1169 = vmatmul.f32.gmra.mxu0 %v732
        %v1170 = vpop.f32.mrf.mxu0
        %v1171 = vadd.f32 %v1145, %v1170
        %1172 = vdwg.mxu0
        %s1173 = scalar_lea.vmem %s8, 64
        %v1174 = vld [vmem:[%s1173] sm:$0xff]
        %v1175 = vld [vmem:[%s1173 + $0x8] sm:$0xff]
        %v1176 = vld [vmem:[%s1173 + $0x10] sm:$0xff]
        %v1177 = vld [vmem:[%s1173 + $0x18] sm:$0xff]
        %s1178 = scalar_lea.vmem %s9, 2
        %v1179 = vld [vmem:[%s1178] sm:$0x1]
        %v1181 = vperm.slane %v1179, 0
        %1183 = vmatpush.msra.mxu0 0.0
        %1184 = vmatpush.msra.mxu0 0.0
        %1185 = vmatpush.msra.mxu0 0.0
        %1186 = vmatpush.msra.mxu0 0.0
        %1187 = vmatpush.msra.mxu0 0.0
        %1188 = vmatpush.msra.mxu0 0.0
        %1189 = vmatpush.msra.mxu0 0.0
        %1190 = vmatpush.msra.mxu0 0.0
        %1191 = vmatpush.msra.mxu0 0.0
        %1192 = vmatpush.msra.mxu0 0.0
        %1193 = vmatpush.msra.mxu0 0.0
        %1194 = vmatpush.msra.mxu0 0.0
        %1195 = vmatpush.msra.mxu0 %v1177
        %1196 = vmatpush.msra.mxu0 %v1176
        %1197 = vmatpush.msra.mxu0 %v1175
        %1198 = vmatpush.msra.mxu0 %v1174
        %1199 = vmatmul.f32.gmra.mxu0 %v726
        %v1200 = vpop.f32.mrf.mxu0
        %v1201 = vadd.f32 %v1181, %v1200
        %1202 = vmatmul.f32.gmra.mxu0 %v729
        %v1203 = vpop.f32.mrf.mxu0
        %v1204 = vadd.f32 %v1181, %v1203
        %1205 = vmatmul.f32.gmra.mxu0 %v732
        %v1206 = vpop.f32.mrf.mxu0
        %v1207 = vadd.f32 %v1181, %v1206
        %1208 = vdwg.mxu0
        %v1210 = vsel %vm794, %v1136, 0
        %v1213 = vsel %vm794, %v1165, 0
        %v1216 = vsel %vm794, %v1168, 0
        %v1219 = vsel %vm794, %v1171, 0
        %1221 = vmatpush.xpose.msra.mxu0 0.0
        %1222 = vmatpush.xpose.msra.mxu0 0.0
        %1223 = vmatpush.xpose.msra.mxu0 0.0
        %1224 = vmatpush.xpose.msra.mxu0 0.0
        %1225 = vmatpush.xpose.msra.mxu0 0.0
        %1226 = vmatpush.xpose.msra.mxu0 0.0
        %1227 = vmatpush.xpose.msra.mxu0 0.0
        %1228 = vmatpush.xpose.msra.mxu0 0.0
        %1229 = vmatpush.xpose.msra.mxu0 0.0
        %1230 = vmatpush.xpose.msra.mxu0 0.0
        %1231 = vmatpush.xpose.msra.mxu0 0.0
        %1232 = vmatpush.xpose.msra.mxu0 0.0
        %1233 = vmatpush.xpose.msra.mxu0 0.0
        %1234 = vmatpush.xpose.msra.mxu0 %v1219
        %1235 = vmatpush.xpose.msra.mxu0 %v1216
        %1236 = vmatpush.xpose.msra.mxu0 %v1213
        %1237 = vmatmul.f32.gmra.mxu0 %v1210
        %v1238 = vpop.f32.mrf.mxu0
        %v1239 = vadd.f32 0.0, %v1238
        %1240 = vdwg.mxu0
        %v1241 = vsel %vm827, %v1239, -inf
        %1242 = vmax.xlane.f32.xlu0 %v1241
        %v1243 = vpop.xlane.xlu0 %1242
        %v1244 = vsub.f32 %v1239, %v1243
        %v1245 = vmul.f32 %v1244, 1.442695
        %v1246 = vpow.pop %v1245
        %v1247 = vsel %vm827, %v1246, 0.0
        %1248 = vadd.xlane.f32.xlu0 %v1247
        %v1249 = vpop.xlane.xlu0 %1248
        %v1250 = vrcp.pop %v1249
        %v1251 = vmul.f32 %v1249, %v1250
        %v1252 = vsub.f32 1.0, %v1251
        %v1253 = vmul.f32 %v1250, %v1252
        %v1254 = vadd.f32 %v1250, %v1253
        %vm1255 = vweird.f32 %v1249
        %vm1256 = vweird.f32 %v1250
        %vm1257 = vmor %vm1255, %vm1256
        %v1258 = vsel %vm1257, %v1250, %v1254
        %v1259 = vand.u32 2147483647, %v1249
        %vm1260 = vcmp.eq.f32.partialorder %v1259, 8.507059e+37
        %v1261 = vand.u32 %v1249, 2147483648
        %v1262 = vor.u32 1.1754944e-38, %v1261
        %v1263 = vsel %vm1260, %v1262, %v1258
        %v1264 = vmul.f32 %v1246, %v1263
        %v1266 = vsel %vm827, %v1264, 0
        %1268 = vmatpush.msra.mxu0 0.0
        %1269 = vmatpush.msra.mxu0 0.0
        %1270 = vmatpush.msra.mxu0 0.0
        %1271 = vmatpush.msra.mxu0 0.0
        %1272 = vmatpush.msra.mxu0 0.0
        %1273 = vmatpush.msra.mxu0 0.0
        %1274 = vmatpush.msra.mxu0 0.0
        %1275 = vmatpush.msra.mxu0 0.0
        %1276 = vmatpush.msra.mxu0 0.0
        %1277 = vmatpush.msra.mxu0 0.0
        %1278 = vmatpush.msra.mxu0 0.0
        %1279 = vmatpush.msra.mxu0 0.0
        %1280 = vmatpush.msra.mxu0 0.0
        %1281 = vmatpush.msra.mxu0 %v1207
        %1282 = vmatpush.msra.mxu0 %v1204
        %1283 = vmatpush.msra.mxu0 %v1201
        %1284 = vmatmul.f32.gmra.mxu0 %v1266
        %v1285 = vpop.f32.mrf.mxu0
        %v1286 = vadd.f32 0.0, %v1285
        %1287 = vdwg.mxu0
        %s1288 = scalar_lea.vmem %s10, 16
        %v1289 = vld [vmem:[%s1288] sm:$0xff]
        %v1291 = vsel %vm794, %v1286, 0
        %1293 = vmatpush.msra.mxu0 0.0
        %1294 = vmatpush.msra.mxu0 0.0
        %1295 = vmatpush.msra.mxu0 0.0
        %1296 = vmatpush.msra.mxu0 0.0
        %1297 = vmatpush.msra.mxu0 0.0
        %1298 = vmatpush.msra.mxu0 0.0
        %1299 = vmatpush.msra.mxu0 0.0
        %1300 = vmatpush.msra.mxu0 0.0
        %1301 = vmatpush.msra.mxu0 0.0
        %1302 = vmatpush.msra.mxu0 0.0
        %1303 = vmatpush.msra.mxu0 0.0
        %1304 = vmatpush.msra.mxu0 0.0
        %1305 = vmatpush.msra.mxu0 0.0
        %1306 = vmatpush.msra.mxu0 0.0
        %1307 = vmatpush.msra.mxu0 0.0
        %1308 = vmatpush.msra.mxu0 %v1289
        %1309 = vmatmul.f32.gmra.mxu0 %v1291
        %v1310 = vpop.f32.mrf.mxu0
        %v1311 = vadd.f32 0.0, %v1310
        %1312 = vdwg.mxu0
        %v1313 = vadd.f32 %v1104, %v1311
        %s1314 = scalar_lea.vmem %s4, 96
        %v1315 = vld [vmem:[%s1314] sm:$0xff]
        %v1316 = vld [vmem:[%s1314 + $0x8] sm:$0xff]
        %v1317 = vld [vmem:[%s1314 + $0x10] sm:$0xff]
        %v1318 = vld [vmem:[%s1314 + $0x18] sm:$0xff]
        %s1319 = scalar_lea.vmem %s5, 3
        %v1320 = vld [vmem:[%s1319] sm:$0x1]
        %v1322 = vperm.slane %v1320, 0
        %1324 = vmatpush.msra.mxu0 0.0
        %1325 = vmatpush.msra.mxu0 0.0
        %1326 = vmatpush.msra.mxu0 0.0
        %1327 = vmatpush.msra.mxu0 0.0
        %1328 = vmatpush.msra.mxu0 0.0
        %1329 = vmatpush.msra.mxu0 0.0
        %1330 = vmatpush.msra.mxu0 0.0
        %1331 = vmatpush.msra.mxu0 0.0
        %1332 = vmatpush.msra.mxu0 0.0
        %1333 = vmatpush.msra.mxu0 0.0
        %1334 = vmatpush.msra.mxu0 0.0
        %1335 = vmatpush.msra.mxu0 0.0
        %1336 = vmatpush.msra.mxu0 %v1318
        %1337 = vmatpush.msra.mxu0 %v1317
        %1338 = vmatpush.msra.mxu0 %v1316
        %1339 = vmatpush.msra.mxu0 %v1315
        %1340 = vmatmul.f32.gmra.mxu0 %v694
        %v1341 = vpop.f32.mrf.mxu0
        %v1342 = vadd.f32 %v1322, %v1341
        %1343 = vdwg.mxu0
        %v1344 = vmul.f32 %v1342, 0.35355338
        %s1345 = scalar_lea.vmem %s6, 96
        %v1346 = vld [vmem:[%s1345] sm:$0xff]
        %v1347 = vld [vmem:[%s1345 + $0x8] sm:$0xff]
        %v1348 = vld [vmem:[%s1345 + $0x10] sm:$0xff]
        %v1349 = vld [vmem:[%s1345 + $0x18] sm:$0xff]
        %s1350 = scalar_lea.vmem %s7, 3
        %v1351 = vld [vmem:[%s1350] sm:$0x1]
        %v1353 = vperm.slane %v1351, 0
        %1355 = vmatpush.msra.mxu0 0.0
        %1356 = vmatpush.msra.mxu0 0.0
        %1357 = vmatpush.msra.mxu0 0.0
        %1358 = vmatpush.msra.mxu0 0.0
        %1359 = vmatpush.msra.mxu0 0.0
        %1360 = vmatpush.msra.mxu0 0.0
        %1361 = vmatpush.msra.mxu0 0.0
        %1362 = vmatpush.msra.mxu0 0.0
        %1363 = vmatpush.msra.mxu0 0.0
        %1364 = vmatpush.msra.mxu0 0.0
        %1365 = vmatpush.msra.mxu0 0.0
        %1366 = vmatpush.msra.mxu0 0.0
        %1367 = vmatpush.msra.mxu0 %v1349
        %1368 = vmatpush.msra.mxu0 %v1348
        %1369 = vmatpush.msra.mxu0 %v1347
        %1370 = vmatpush.msra.mxu0 %v1346
        %1371 = vmatmul.f32.gmra.mxu0 %v726
        %v1372 = vpop.f32.mrf.mxu0
        %v1373 = vadd.f32 %v1353, %v1372
        %1374 = vmatmul.f32.gmra.mxu0 %v729
        %v1375 = vpop.f32.mrf.mxu0
        %v1376 = vadd.f32 %v1353, %v1375
        %1377 = vmatmul.f32.gmra.mxu0 %v732
        %v1378 = vpop.f32.mrf.mxu0
        %v1379 = vadd.f32 %v1353, %v1378
        %1380 = vdwg.mxu0
        %s1381 = scalar_lea.vmem %s8, 96
        %v1382 = vld [vmem:[%s1381] sm:$0xff]
        %v1383 = vld [vmem:[%s1381 + $0x8] sm:$0xff]
        %v1384 = vld [vmem:[%s1381 + $0x10] sm:$0xff]
        %v1385 = vld [vmem:[%s1381 + $0x18] sm:$0xff]
        %s1386 = scalar_lea.vmem %s9, 3
        %v1387 = vld [vmem:[%s1386] sm:$0x1]
        %v1389 = vperm.slane %v1387, 0
        %1391 = vmatpush.msra.mxu0 0.0
        %1392 = vmatpush.msra.mxu0 0.0
        %1393 = vmatpush.msra.mxu0 0.0
        %1394 = vmatpush.msra.mxu0 0.0
        %1395 = vmatpush.msra.mxu0 0.0
        %1396 = vmatpush.msra.mxu0 0.0
        %1397 = vmatpush.msra.mxu0 0.0
        %1398 = vmatpush.msra.mxu0 0.0
        %1399 = vmatpush.msra.mxu0 0.0
        %1400 = vmatpush.msra.mxu0 0.0
        %1401 = vmatpush.msra.mxu0 0.0
        %1402 = vmatpush.msra.mxu0 0.0
        %1403 = vmatpush.msra.mxu0 %v1385
        %1404 = vmatpush.msra.mxu0 %v1384
        %1405 = vmatpush.msra.mxu0 %v1383
        %1406 = vmatpush.msra.mxu0 %v1382
        %1407 = vmatmul.f32.gmra.mxu0 %v726
        %v1408 = vpop.f32.mrf.mxu0
        %v1409 = vadd.f32 %v1389, %v1408
        %1410 = vmatmul.f32.gmra.mxu0 %v729
        %v1411 = vpop.f32.mrf.mxu0
        %v1412 = vadd.f32 %v1389, %v1411
        %1413 = vmatmul.f32.gmra.mxu0 %v732
        %v1414 = vpop.f32.mrf.mxu0
        %v1415 = vadd.f32 %v1389, %v1414
        %1416 = vdwg.mxu0
        %v1418 = vsel %vm794, %v1344, 0
        %v1421 = vsel %vm794, %v1373, 0
        %v1424 = vsel %vm794, %v1376, 0
        %v1427 = vsel %vm794, %v1379, 0
        %1429 = vmatpush.xpose.msra.mxu0 0.0
        %1430 = vmatpush.xpose.msra.mxu0 0.0
        %1431 = vmatpush.xpose.msra.mxu0 0.0
        %1432 = vmatpush.xpose.msra.mxu0 0.0
        %1433 = vmatpush.xpose.msra.mxu0 0.0
        %1434 = vmatpush.xpose.msra.mxu0 0.0
        %1435 = vmatpush.xpose.msra.mxu0 0.0
        %1436 = vmatpush.xpose.msra.mxu0 0.0
        %1437 = vmatpush.xpose.msra.mxu0 0.0
        %1438 = vmatpush.xpose.msra.mxu0 0.0
        %1439 = vmatpush.xpose.msra.mxu0 0.0
        %1440 = vmatpush.xpose.msra.mxu0 0.0
        %1441 = vmatpush.xpose.msra.mxu0 0.0
        %1442 = vmatpush.xpose.msra.mxu0 %v1427
        %1443 = vmatpush.xpose.msra.mxu0 %v1424
        %1444 = vmatpush.xpose.msra.mxu0 %v1421
        %1445 = vmatmul.f32.gmra.mxu0 %v1418
        %v1446 = vpop.f32.mrf.mxu0
        %v1447 = vadd.f32 0.0, %v1446
        %1448 = vdwg.mxu0
        %v1449 = vsel %vm827, %v1447, -inf
        %1450 = vmax.xlane.f32.xlu0 %v1449
        %v1451 = vpop.xlane.xlu0 %1450
        %v1452 = vsub.f32 %v1447, %v1451
        %v1453 = vmul.f32 %v1452, 1.442695
        %v1454 = vpow.pop %v1453
        %v1455 = vsel %vm827, %v1454, 0.0
        %1456 = vadd.xlane.f32.xlu0 %v1455
        %v1457 = vpop.xlane.xlu0 %1456
        %v1458 = vrcp.pop %v1457
        %v1459 = vmul.f32 %v1457, %v1458
        %v1460 = vsub.f32 1.0, %v1459
        %v1461 = vmul.f32 %v1458, %v1460
        %v1462 = vadd.f32 %v1458, %v1461
        %vm1463 = vweird.f32 %v1457
        %vm1464 = vweird.f32 %v1458
        %vm1465 = vmor %vm1463, %vm1464
        %v1466 = vsel %vm1465, %v1458, %v1462
        %v1467 = vand.u32 2147483647, %v1457
        %vm1468 = vcmp.eq.f32.partialorder %v1467, 8.507059e+37
        %v1469 = vand.u32 %v1457, 2147483648
        %v1470 = vor.u32 1.1754944e-38, %v1469
        %v1471 = vsel %vm1468, %v1470, %v1466
        %v1472 = vmul.f32 %v1454, %v1471
        %v1474 = vsel %vm827, %v1472, 0
        %1476 = vmatpush.msra.mxu0 0.0
        %1477 = vmatpush.msra.mxu0 0.0
        %1478 = vmatpush.msra.mxu0 0.0
        %1479 = vmatpush.msra.mxu0 0.0
        %1480 = vmatpush.msra.mxu0 0.0
        %1481 = vmatpush.msra.mxu0 0.0
        %1482 = vmatpush.msra.mxu0 0.0
        %1483 = vmatpush.msra.mxu0 0.0
        %1484 = vmatpush.msra.mxu0 0.0
        %1485 = vmatpush.msra.mxu0 0.0
        %1486 = vmatpush.msra.mxu0 0.0
        %1487 = vmatpush.msra.mxu0 0.0
        %1488 = vmatpush.msra.mxu0 0.0
        %1489 = vmatpush.msra.mxu0 %v1415
        %1490 = vmatpush.msra.mxu0 %v1412
        %1491 = vmatpush.msra.mxu0 %v1409
        %1492 = vmatmul.f32.gmra.mxu0 %v1474
        %v1493 = vpop.f32.mrf.mxu0
        %v1494 = vadd.f32 0.0, %v1493
        %1495 = vdwg.mxu0
        %s1496 = scalar_lea.vmem %s10, 24
        %v1497 = vld [vmem:[%s1496] sm:$0xff]
        %v1499 = vsel %vm794, %v1494, 0
        %1501 = vmatpush.msra.mxu0 0.0
        %1502 = vmatpush.msra.mxu0 0.0
        %1503 = vmatpush.msra.mxu0 0.0
        %1504 = vmatpush.msra.mxu0 0.0
        %1505 = vmatpush.msra.mxu0 0.0
        %1506 = vmatpush.msra.mxu0 0.0
        %1507 = vmatpush.msra.mxu0 0.0
        %1508 = vmatpush.msra.mxu0 0.0
        %1509 = vmatpush.msra.mxu0 0.0
        %1510 = vmatpush.msra.mxu0 0.0
        %1511 = vmatpush.msra.mxu0 0.0
        %1512 = vmatpush.msra.mxu0 0.0
        %1513 = vmatpush.msra.mxu0 0.0
        %1514 = vmatpush.msra.mxu0 0.0
        %1515 = vmatpush.msra.mxu0 0.0
        %1516 = vmatpush.msra.mxu0 %v1497
        %1517 = vmatmul.f32.gmra.mxu0 %v1499
        %v1518 = vpop.f32.mrf.mxu0
        %v1519 = vadd.f32 0.0, %v1518
        %1520 = vdwg.mxu0
        %v1521 = vadd.f32 %v1313, %v1519
        %v1522 = vld [vmem:[%s11] sm:$0x1]
        %v1524 = vperm.slane %v1522, 0
        %v1526 = vadd.f32 %v1521, %v1524
        %v1527 = vadd.f32 %v1526, %v572
        %v1528 = vld [vmem:[%s12] sm:$0x1]
        %v1529 = vld [vmem:[%s12 + $0x1] sm:$0x1]
        %v1530 = vsel %vm575, %v1527, 0.0
        %1531 = vadd.xlane.f32.xlu0 %v1530
        %v1532 = vpop.xlane.xlu0 %1531
        %v1533 = vmul.f32 %v1532, %v591
        %v1534 = vsub.f32 %v1527, %v1533
        %v1535 = vmul.f32 %v1534, %v1534
        %v1536 = vsel %vm575, %v1535, 0.0
        %1537 = vadd.xlane.f32.xlu0 %v1536
        %v1538 = vpop.xlane.xlu0 %1537
        %v1539 = vmul.f32 %v1538, %v591
        %v1540 = vadd.f32 %v1539, 1e-05
        %v1541 = vrsqrt.pop %v1540
        %v1542 = vmul.f32 %v1541, %v1540
        %v1543 = vmul.f32 %v1542, %v1541
        %v1544 = vmul.f32 0.5, %v1543
        %v1545 = vsub.f32 1.5, %v1544
        %v1546 = vmul.f32 %v1541, %v1545
        %vm1547 = vweird.f32 %v1540
        %vm1548 = vweird.f32 %v1541
        %vm1549 = vmor %vm1547, %vm1548
        %v1550 = vsel %vm1549, %v1541, %v1546
        %v1551 = vmul.f32 %v1534, %v1550
        %v1552 = vperm.slane %v1528, 0
        %v1553 = vmul.f32 %v1551, %v1552
        %v1554 = vperm.slane %v1529, 0
        %v1555 = vadd.f32 %v1553, %v1554
        %v1556 = vld [vmem:[%s13] sm:$0xff]
        %v1557 = vld [vmem:[%s13 + $0x8] sm:$0xff]
        %v1558 = vld [vmem:[%s13 + $0x10] sm:$0xff]
        %v1559 = vld [vmem:[%s13 + $0x18] sm:$0xff]
        %v1560 = vld [vmem:[%s14] sm:$0x1]
        %v1562 = vperm.slane %v1560, 0
        %v1565 = vsel %vm575, %v1555, 0
        %1567 = vmatpush.msra.mxu0 0.0
        %1568 = vmatpush.msra.mxu0 0.0
        %1569 = vmatpush.msra.mxu0 0.0
        %1570 = vmatpush.msra.mxu0 0.0
        %1571 = vmatpush.msra.mxu0 0.0
        %1572 = vmatpush.msra.mxu0 0.0
        %1573 = vmatpush.msra.mxu0 0.0
        %1574 = vmatpush.msra.mxu0 0.0
        %1575 = vmatpush.msra.mxu0 0.0
        %1576 = vmatpush.msra.mxu0 0.0
        %1577 = vmatpush.msra.mxu0 0.0
        %1578 = vmatpush.msra.mxu0 0.0
        %1579 = vmatpush.msra.mxu0 %v1559
        %1580 = vmatpush.msra.mxu0 %v1558
        %1581 = vmatpush.msra.mxu0 %v1557
        %1582 = vmatpush.msra.mxu0 %v1556
        %1583 = vmatmul.f32.gmra.mxu0 %v1565
        %v1584 = vpop.f32.mrf.mxu0
        %v1585 = vadd.f32 %v1562, %v1584
        %1586 = vdwg.mxu0
        %v1587 = vmul.f32 %v1585, 0.5
        %v1588 = vmul.f32 %v1585, 0.044715
        %v1589 = vmul.f32 %v1588, %v1585
        %v1590 = vmul.f32 %v1589, %v1585
        %v1591 = vadd.f32 %v1585, %v1590
        %v1592 = vmul.f32 %v1591, 0.7978846
        %v1593 = vtanh.pop %v1592
        %v1594 = vadd.f32 %v1593, 1.0
        %v1595 = vmul.f32 %v1587, %v1594
        %v1596 = vld [vmem:[%s15] sm:$0xff]
        %v1597 = vld [vmem:[%s15 + $0x8] sm:$0xff]
        %v1598 = vld [vmem:[%s15 + $0x10] sm:$0xff]
        %v1599 = vld [vmem:[%s15 + $0x18] sm:$0xff]
        %v1600 = vld [vmem:[%s16] sm:$0x1]
        %v1602 = vperm.slane %v1600, 0
        %v1605 = vsel %vm575, %v1595, 0
        %1607 = vmatpush.msra.mxu0 0.0
        %1608 = vmatpush.msra.mxu0 0.0
        %1609 = vmatpush.msra.mxu0 0.0
        %1610 = vmatpush.msra.mxu0 0.0
        %1611 = vmatpush.msra.mxu0 0.0
        %1612 = vmatpush.msra.mxu0 0.0
        %1613 = vmatpush.msra.mxu0 0.0
        %1614 = vmatpush.msra.mxu0 0.0
        %1615 = vmatpush.msra.mxu0 0.0
        %1616 = vmatpush.msra.mxu0 0.0
        %1617 = vmatpush.msra.mxu0 0.0
        %1618 = vmatpush.msra.mxu0 0.0
        %1619 = vmatpush.msra.mxu0 %v1599
        %1620 = vmatpush.msra.mxu0 %v1598
        %1621 = vmatpush.msra.mxu0 %v1597
        %1622 = vmatpush.msra.mxu0 %v1596
        %1623 = vmatmul.f32.gmra.mxu0 %v1605
        %v1624 = vpop.f32.mrf.mxu0
        %v1625 = vadd.f32 %v1602, %v1624
        %1626 = vdwg.mxu0
        %v1627 = vadd.f32 %v1625, %v1527
        %1628 = vst.msk [vmem:[%s568] sm:$0xff] %vm575, %v1627
        %s1629 = sand.u32 %s404, 1
        %s1630 = scalar_lea.sflag [#allocation4], %s1629
        %s1631 = sand.u32 %s404, 1
        %s1632 = smul.addr %s1631, 8
        %s1633 = scalar_lea.vmem [#allocation5], %s1632
        // Predicated region
        $region93: #{tpu_custom_call.1} parent=87 // pred_check
          %p1634 = pneg %p414
        $region94: #{tpu_custom_call.1} parent=87 // pred_check_branch
          %1636 = sbr.rel (%p1634) target = $region96
        $region95: #{tpu_custom_call.1} parent=87 // pred_region
          %1638 = vsyncadd %s1630, 0
          %s1639 = smul.addr %s34, 8
          %s1640 = scalar_lea.hbm %s17, %s1639
          %s1642 = sshll.u32 %s1633, 4
          %s1643 = int_to_ptr.vmem [resolvable:$true] %s1642
          %s1644 = sshll.u32 %s1640, 4
          %s1645 = int_to_ptr.hbm [resolvable:$true] %s1644
          %1647 = dma.vmem_to_hbm [thread:$0]  %s1643, 128, %s1645, %s1630
        $region96: #{tpu_custom_call.1} parent=87 // pred_fallthru
          _
      $region88: #{tpu_custom_call.1} parent=5 // pred_fallthru
        _
      %p1648 = scmp.le.s32.totalorder 2, %s29
      // Predicated region
      $region97: #{tpu_custom_call.1} parent=5 // pred_check
        %p1649 = pneg %p1648
      $region98: #{tpu_custom_call.1} parent=5 // pred_check_branch
        %1651 = sbr.rel (%p1649) target = $region100
      $region99: #{tpu_custom_call.1} parent=5 // pred_region
        %s1652 = ssub.s32 %s29, 2
        // Predicated region
        $region101: #{tpu_custom_call.1} parent=99 // pred_check
          %p1653 = pneg %p420
        $region102: #{tpu_custom_call.1} parent=99 // pred_check_branch
          %1655 = sbr.rel (%p1653) target = $region104
        $region103: #{tpu_custom_call.1} parent=99 // pred_region
          %s1656 = sand.u32 %s405, 1
          %s1657 = scalar_lea.sflag [#allocation4], %s1656
          %s1658 = sand.u32 %s405, 1
          %s1659 = smul.addr %s1658, 8
          %s1660 = scalar_lea.vmem [#allocation5], %s1659
          %1662 = dma.done %s1657, 128
        $region104: #{tpu_custom_call.1} parent=99 // pred_fallthru
          _
      $region100: #{tpu_custom_call.1} parent=5 // pred_fallthru
        _
    $region6: #{tpu_custom_call.1} parent=1 // loop_footer
      %s33 = sadd.s32 1, %s29
    $region7: #{tpu_custom_call.1} parent=1 // loop_footer_branch
      %28 = sbr.rel target = $region3
    $region8: #{tpu_custom_call.1} parent=1 // loop_exit
      _
    %1663 = vsyncpa [#allocation3], 1
    %s1664 = scalar_lea.sflag [#allocation3], 1
    %1665 = vsyncpa %s1664, 1
    %1666 = vsyncpa [#allocation4], 1
    %s1667 = scalar_lea.sflag [#allocation4], 1
    %1668 = vsyncpa %s1667, 1

</llo_original>
